<compile_context>
chip_gen: v7x
topology: tpu7x:2x2x1
jax: 0.10.0
libtpu: 0.0.40
codegen_flags: <defaults>
</compile_context>

<pallas_src>
import jax
import jax.numpy as jnp
import numpy as np
from jax.experimental import pallas as pl
from jax.experimental.pallas import tpu as pltpu


# --------------------------- kernel 1: point MLP ------------------------------

def point_mlp_kernel(x_ref,
                     w1_ref, b1_ref,
                     w2_ref, b2_ref,
                     w3_ref, b3_ref,
                     o_ref):
    n = pl.program_id(1)
    TB, TN, K = x_ref.shape

    # (TB, TN, K) -> (TB*TN, K): one big-M matmul per layer on the MXU.
    x = x_ref[...].reshape(TB * TN, K)
    h = jnp.maximum(
        jnp.dot(x, w1_ref[...], preferred_element_type=jnp.float32) + b1_ref[...], 0.0)
    h = jnp.maximum(
        jnp.dot(h, w2_ref[...], preferred_element_type=jnp.float32) + b2_ref[...], 0.0)
    h = jnp.maximum(
        jnp.dot(h, w3_ref[...], preferred_element_type=jnp.float32) + b3_ref[...], 0.0)

    # Per-batch-row max over this TN-chunk of points (static unrolled, 2-D
    # sublane reductions only).
    parts = [jnp.max(h[t * TN:(t + 1) * TN, :], axis=0, keepdims=True)
             for t in range(TB)]
    hm = parts[0] if TB == 1 else jnp.concatenate(parts, axis=0)   # (TB, 1024)

    # Running max across the points grid axis: output block is resident
    # (same block index for every n), so it acts as the accumulator.
    @pl.when(n == 0)
    def _():
        o_ref[...] = hm

    @pl.when(n > 0)
    def _():
        o_ref[...] = jnp.maximum(o_ref[...], hm)


# ----------------------------- kernel 2: FC head ------------------------------

def fc_head_kernel(g_ref,
                   wf1_ref, bf1_ref,
                   wf2_ref, bf2_ref,
                   wf3_ref, bf3_ref,
                   o_ref):
    # One M=B matmul chain for the whole batch; output block is the full
    # (B, k*k) array (dense store, no (8,128) fragility).
    f = jnp.maximum(
        jnp.dot(g_ref[...], wf1_ref[...], preferred_element_type=jnp.float32)
        + bf1_ref[...], 0.0)
    f = jnp.maximum(
        jnp.dot(f, wf2_ref[...], preferred_element_type=jnp.float32)
        + bf2_ref[...], 0.0)
    out = jnp.dot(f, wf3_ref[...], preferred_element_type=jnp.float32) + bf3_ref[...]
    o_ref[...] = out.astype(o_ref.dtype)


# --------------------------------- wrapper ------------------------------------

def tnet_forward(x_bnk, params, *, tb=None, tn=None):
    """x_bnk: (B, N, K) float32 (points-major).  Returns (B, K, K)."""
    B, N, K = x_bnk.shape
    (w1, b1), (w2, b2), (w3, b3), (wf1, bf1), (wf2, bf2), (wf3, bf3) = params
    c1, c2, c3 = w1.shape[1], w2.shape[1], w3.shape[1]      # 64, 128, 1024
    f1, f2, kk = wf1.shape[1], wf2.shape[1], wf3.shape[1]   # 512, 256, k*k

    if tb is None:
        tb = B if B <= 8 else 8
    if tn is None:
        tn = N if N <= 512 else 512
    assert B % tb == 0 and N % tn == 0, "choose tile sizes dividing (B, N)"

    def wspec(shape):
        nd = len(shape)
        return pl.BlockSpec(shape, lambda b, n, _nd=nd: (0,) * _nd)

    flops1 = 2 * B * N * (K * c1 + c1 * c2 + c2 * c3)
    bytes1 = 4 * (B * N * K
                  + K * c1 + c1 + c1 * c2 + c2 + c2 * c3 + c3
                  + B * c3)

    pooled = pl.pallas_call(
        point_mlp_kernel,
        out_shape=jax.ShapeDtypeStruct((B, c3), jnp.float32),
        grid=(B // tb, N // tn),
        in_specs=[
            pl.BlockSpec((tb, tn, K), lambda b, n: (b, n, 0)),
            wspec(w1.shape), wspec(b1.shape),
            wspec(w2.shape), wspec(b2.shape),
            wspec(w3.shape), wspec(b3.shape),
        ],
        out_specs=pl.BlockSpec((tb, c3), lambda b, n: (b, 0)),
        compiler_params=pltpu.CompilerParams(
            dimension_semantics=("parallel", "arbitrary")),
        cost_estimate=pl.CostEstimate(
            flops=flops1, transcendentals=0, bytes_accessed=bytes1),
    )(x_bnk, w1, b1, w2, b2, w3, b3)

    def hspec(shape):
        nd = len(shape)
        return pl.BlockSpec(shape, lambda i, _nd=nd: (0,) * _nd)

    flops2 = 2 * B * (c3 * f1 + f1 * f2 + f2 * kk)
    bytes2 = 4 * (B * c3
                  + c3 * f1 + f1 + f1 * f2 + f2 + f2 * kk + kk
                  + B * kk)

    out = pl.pallas_call(
        fc_head_kernel,
        out_shape=jax.ShapeDtypeStruct((B, kk), jnp.float32),
        grid=(1,),
        in_specs=[
            hspec((B, c3)),
            hspec(wf1.shape), hspec(bf1.shape),
            hspec(wf2.shape), hspec(bf2.shape),
            hspec(wf3.shape), hspec(bf3.shape),
        ],
        out_specs=hspec((B, kk)),
        compiler_params=pltpu.CompilerParams(
            dimension_semantics=("arbitrary",)),
        cost_estimate=pl.CostEstimate(
            flops=flops2, transcendentals=0, bytes_accessed=bytes2),
    )(pooled, wf1, bf1, wf2, bf2, wf3, bf3)

    return out.reshape(B, K, K)


# ----------------------------- parameter setup --------------------------------

def _fold_bn(w, cb, gamma, beta, mean, var, eps=1e-5):
    """Fold eval-mode BatchNorm1d into a preceding (x @ w + cb) layer.

    w: (in, out), cb/gamma/beta/mean/var: (out,)
    Returns fused (w', b') with b' shaped (1, out) for lane-friendly broadcast.
    """
    scale = gamma / jnp.sqrt(var + eps)
    w_f = w * scale[None, :]
    b_f = (cb - mean) * scale + beta
    return w_f.astype(jnp.float32), b_f[None, :].astype(jnp.float32)


def make_tnet_params(key, k):
    dims = [(k, 64), (64, 128), (128, 1024), (1024, 512), (512, 256), (256, k * k)]
    keys = jax.random.split(key, 64)
    ki = iter(range(64))

    def nxt():
        return keys[next(ki)]

    params = []
    # conv1/bn1, conv2/bn2, conv3/bn3, fc1/bn4, fc2/bn5  (all BN-folded, eval mode)
    for (cin, cout) in dims[:5]:
        w = jax.random.normal(nxt(), (cin, cout), jnp.float32) * 0.1
        b = jax.random.normal(nxt(), (cout,), jnp.float32) * 0.1
        gamma = jax.random.uniform(nxt(), (cout,), jnp.float32, 0.5, 1.5)
        beta = jax.random.normal(nxt(), (cout,), jnp.float32) * 0.1
        mean = jax.random.normal(nxt(), (cout,), jnp.float32) * 0.1
        var = jax.random.uniform(nxt(), (cout,), jnp.float32, 0.5, 1.5)
        params.append(_fold_bn(w, b, gamma, beta, mean, var))

    # fc3: no BN; add flattened identity (x + iden) into its bias.
    cin, cout = dims[5]
    w = jax.random.normal(nxt(), (cin, cout), jnp.float32) * 0.1
    b = jax.random.normal(nxt(), (cout,), jnp.float32) * 0.1
    b = b + jnp.eye(k, dtype=jnp.float32).reshape(-1)
    params.append((w.astype(jnp.float32), b[None, :].astype(jnp.float32)))
    return params


def tnet_reference(x_bnk, params):
    """Plain-JAX reference for validation."""
    (w1, b1), (w2, b2), (w3, b3), (wf1, bf1), (wf2, bf2), (wf3, bf3) = params
    B, N, K = x_bnk.shape
    h = jax.nn.relu(x_bnk @ w1 + b1)
    h = jax.nn.relu(h @ w2 + b2)
    h = jax.nn.relu(h @ w3 + b3)
    g = jnp.max(h, axis=1)                      # (B, 1024)
    f = jax.nn.relu(g @ wf1 + bf1)
    f = jax.nn.relu(f @ wf2 + bf2)
    out = f @ wf3 + bf3
    return out.reshape(B, K, K)


if __name__ == "__main__":
    B, K, N = 2, 8, 128   # PyTorch input would be (B, K, N) = (2, 8, 128)
    key = jax.random.PRNGKey(0)
    kx, kp = jax.random.split(key)

    # PyTorch-layout input (B, k, N); transpose to points-major (B, N, k).
    x_torch_layout = jax.random.normal(kx, (B, K, N), jnp.float32)
    x_bnk = jnp.transpose(x_torch_layout, (0, 2, 1))

    # TODO(synk): BatchNorm is folded in eval mode (running stats); training-mode
    # batch statistics are not implemented.
    params = make_tnet_params(kp, K)

    y = tnet_forward(x_bnk, params)
    y = jax.block_until_ready(y)

    y_ref = tnet_reference(x_bnk, params)
    assert y.shape == (B, K, K)
    np.testing.assert_allclose(np.asarray(y), np.asarray(y_ref), rtol=1e-4, atol=1e-4)

    print("KERNEL_OK")
</pallas_src>

<mosaic_0001>
module attributes {stable_mosaic.version = 11 : i64} {
  func.func @point_mlp_kernel(%arg0: i32, %arg1: i32, %arg2: memref<2x128x8xf32, #tpu.memory_space<vmem>>, %arg3: memref<8x64xf32, #tpu.memory_space<vmem>>, %arg4: memref<1x64xf32, #tpu.memory_space<vmem>>, %arg5: memref<64x128xf32, #tpu.memory_space<vmem>>, %arg6: memref<1x128xf32, #tpu.memory_space<vmem>>, %arg7: memref<128x1024xf32, #tpu.memory_space<vmem>>, %arg8: memref<1x1024xf32, #tpu.memory_space<vmem>>, %arg9: memref<2x1024xf32, #tpu.memory_space<vmem>>) attributes {dimension_semantics = [#tpu.dimension_semantics<parallel>, #tpu.dimension_semantics<arbitrary>], iteration_bounds = array<i64: 1, 1>, scalar_prefetch = 0 : i64, scratch_operands = 0 : i64, tpu.core_type = #tpu.core_type<tc>, window_params = [{transform_indices = @transform_0, window_bounds = array<i64: 2, 128, 8>}, {pipeline_mode = #tpu.pipeline_mode<synchronous>, transform_indices = @transform_1, window_bounds = array<i64: 8, 64>}, {pipeline_mode = #tpu.pipeline_mode<synchronous>, transform_indices = @transform_2, window_bounds = array<i64: 1, 64>}, {pipeline_mode = #tpu.pipeline_mode<synchronous>, transform_indices = @transform_3, window_bounds = array<i64: 64, 128>}, {pipeline_mode = #tpu.pipeline_mode<synchronous>, transform_indices = @transform_4, window_bounds = array<i64: 1, 128>}, {pipeline_mode = #tpu.pipeline_mode<synchronous>, transform_indices = @transform_5, window_bounds = array<i64: 128, 1024>}, {pipeline_mode = #tpu.pipeline_mode<synchronous>, transform_indices = @transform_6, window_bounds = array<i64: 1, 1024>}, {transform_indices = @transform_7, window_bounds = array<i64: 2, 1024>}]} {
    %c0 = arith.constant 0 : index
    %c0_0 = arith.constant 0 : index
    %c0_1 = arith.constant 0 : index
    %0 = vector.load %arg2[%c0, %c0_0, %c0_1] : memref<2x128x8xf32, #tpu.memory_space<vmem>>, vector<2x128x8xf32>
    %1 = vector.shape_cast %0 : vector<2x128x8xf32> to vector<256x8xf32>
    %c0_2 = arith.constant 0 : index
    %c0_3 = arith.constant 0 : index
    %2 = vector.load %arg3[%c0_2, %c0_3] : memref<8x64xf32, #tpu.memory_space<vmem>>, vector<8x64xf32>
    %cst = arith.constant dense<0.000000e+00> : vector<256x64xf32>
    %3 = tpu.matmul %1, %2, %cst {dimension_numbers = #tpu.dot_dimension_numbers<[1], [0], [0], [1], [0, 0, 1, 1], [], []>} : vector<256x8xf32>, vector<8x64xf32>, vector<256x64xf32> -> vector<256x64xf32>
    %c0_4 = arith.constant 0 : index
    %c0_5 = arith.constant 0 : index
    %4 = vector.load %arg4[%c0_4, %c0_5] : memref<1x64xf32, #tpu.memory_space<vmem>>, vector<1x64xf32>
    %5 = vector.broadcast %4 : vector<1x64xf32> to vector<256x64xf32>
    %6 = arith.addf %3, %5 : vector<256x64xf32>
    %cst_6 = arith.constant 0.000000e+00 : f32
    %7 = vector.broadcast %cst_6 : f32 to vector<256x64xf32>
    %8 = arith.maximumf %6, %7 : vector<256x64xf32>
    %c0_7 = arith.constant 0 : index
    %c0_8 = arith.constant 0 : index
    %9 = vector.load %arg5[%c0_7, %c0_8] : memref<64x128xf32, #tpu.memory_space<vmem>>, vector<64x128xf32>
    %cst_9 = arith.constant dense<0.000000e+00> : vector<256x128xf32>
    %10 = tpu.matmul %8, %9, %cst_9 {dimension_numbers = #tpu.dot_dimension_numbers<[1], [0], [0], [1], [0, 0, 1, 1], [], []>} : vector<256x64xf32>, vector<64x128xf32>, vector<256x128xf32> -> vector<256x128xf32>
    %c0_10 = arith.constant 0 : index
    %c0_11 = arith.constant 0 : index
    %11 = vector.load %arg6[%c0_10, %c0_11] : memref<1x128xf32, #tpu.memory_space<vmem>>, vector<1x128xf32>
    %12 = vector.broadcast %11 : vector<1x128xf32> to vector<256x128xf32>
    %13 = arith.addf %10, %12 : vector<256x128xf32>
    %cst_12 = arith.constant 0.000000e+00 : f32
    %14 = vector.broadcast %cst_12 : f32 to vector<256x128xf32>
    %15 = arith.maximumf %13, %14 : vector<256x128xf32>
    %c0_13 = arith.constant 0 : index
    %c0_14 = arith.constant 0 : index
    %16 = vector.load %arg7[%c0_13, %c0_14] : memref<128x1024xf32, #tpu.memory_space<vmem>>, vector<128x1024xf32>
    %cst_15 = arith.constant dense<0.000000e+00> : vector<256x1024xf32>
    %17 = tpu.matmul %15, %16, %cst_15 {dimension_numbers = #tpu.dot_dimension_numbers<[1], [0], [0], [1], [0, 0, 1, 1], [], []>} : vector<256x128xf32>, vector<128x1024xf32>, vector<256x1024xf32> -> vector<256x1024xf32>
    %c0_16 = arith.constant 0 : index
    %c0_17 = arith.constant 0 : index
    %18 = vector.load %arg8[%c0_16, %c0_17] : memref<1x1024xf32, #tpu.memory_space<vmem>>, vector<1x1024xf32>
    %19 = vector.broadcast %18 : vector<1x1024xf32> to vector<256x1024xf32>
    %20 = arith.addf %17, %19 : vector<256x1024xf32>
    %cst_18 = arith.constant 0.000000e+00 : f32
    %21 = vector.broadcast %cst_18 : f32 to vector<256x1024xf32>
    %22 = arith.maximumf %20, %21 : vector<256x1024xf32>
    %23 = vector.extract_strided_slice %22 {offsets = [0, 0], sizes = [128, 1024], strides = [1, 1]} : vector<256x1024xf32> to vector<128x1024xf32>
    %cst_19 = arith.constant dense<0xFF800000> : vector<1024xf32>
    %24 = vector.multi_reduction <maximumf>, %23, %cst_19 [0] : vector<128x1024xf32> to vector<1024xf32>
    %25 = vector.shape_cast %24 : vector<1024xf32> to vector<1x1024xf32>
    %26 = vector.extract_strided_slice %22 {offsets = [128, 0], sizes = [128, 1024], strides = [1, 1]} : vector<256x1024xf32> to vector<128x1024xf32>
    %cst_20 = arith.constant dense<0xFF800000> : vector<1024xf32>
    %27 = vector.multi_reduction <maximumf>, %26, %cst_20 [0] : vector<128x1024xf32> to vector<1024xf32>
    %28 = vector.shape_cast %27 : vector<1024xf32> to vector<1x1024xf32>
    %29 = tpu.concatenate %25, %28 in 0 : vector<1x1024xf32>, vector<1x1024xf32> -> vector<2x1024xf32>
    %c0_i32 = arith.constant 0 : i32
    %30 = arith.cmpi eq, %arg1, %c0_i32 : i32
    %31 = arith.extui %30 : i1 to i32
    %c0_i32_21 = arith.constant 0 : i32
    %32 = arith.cmpi ne, %31, %c0_i32_21 : i32
    scf.if %32 {
      %c0_24 = arith.constant 0 : index
      %c0_25 = arith.constant 0 : index
      %36 = vector.load %arg9[%c0_24, %c0_25] : memref<2x1024xf32, #tpu.memory_space<vmem>>, vector<2x1024xf32>
      tpu.vector_store %arg9[%c0_24, %c0_25], %29 {strides = array<i32>} : memref<2x1024xf32, #tpu.memory_space<vmem>>, vector<2x1024xf32>,
    } else {
    }
    %c0_i32_22 = arith.constant 0 : i32
    %33 = arith.cmpi sgt, %arg1, %c0_i32_22 : i32
    %34 = arith.extui %33 : i1 to i32
    %c0_i32_23 = arith.constant 0 : i32
    %35 = arith.cmpi ne, %34, %c0_i32_23 : i32
    scf.if %35 {
      %c0_24 = arith.constant 0 : index
      %c0_25 = arith.constant 0 : index
      %36 = vector.load %arg9[%c0_24, %c0_25] : memref<2x1024xf32, #tpu.memory_space<vmem>>, vector<2x1024xf32>
      %37 = arith.maximumf %36, %29 : vector<2x1024xf32>
      %c0_26 = arith.constant 0 : index
      %c0_27 = arith.constant 0 : index
      %38 = vector.load %arg9[%c0_26, %c0_27] : memref<2x1024xf32, #tpu.memory_space<vmem>>, vector<2x1024xf32>
      tpu.vector_store %arg9[%c0_26, %c0_27], %37 {strides = array<i32>} : memref<2x1024xf32, #tpu.memory_space<vmem>>, vector<2x1024xf32>,
    } else {
    }
    return
  }
  func.func @transform_0(%arg0: i32, %arg1: i32) -> (i32, i32, i32) {
    %c0_i32 = arith.constant 0 : i32
    %c0_i32_0 = arith.constant 0 : i32
    return %arg0, %arg1, %c0_i32 : i32, i32, i32
  }
  func.func @transform_1(%arg0: i32, %arg1: i32) -> (i32, i32) {
    %c0_i32 = arith.constant 0 : i32
    %c0_i32_0 = arith.constant 0 : i32
    %c0_i32_1 = arith.constant 0 : i32
    return %c0_i32, %c0_i32_0 : i32, i32
  }
  func.func @transform_2(%arg0: i32, %arg1: i32) -> (i32, i32) {
    %c0_i32 = arith.constant 0 : i32
    %c0_i32_0 = arith.constant 0 : i32
    %c0_i32_1 = arith.constant 0 : i32
    return %c0_i32, %c0_i32_0 : i32, i32
  }
  func.func @transform_3(%arg0: i32, %arg1: i32) -> (i32, i32) {
    %c0_i32 = arith.constant 0 : i32
    %c0_i32_0 = arith.constant 0 : i32
    %c0_i32_1 = arith.constant 0 : i32
    return %c0_i32, %c0_i32_0 : i32, i32
  }
  func.func @transform_4(%arg0: i32, %arg1: i32) -> (i32, i32) {
    %c0_i32 = arith.constant 0 : i32
    %c0_i32_0 = arith.constant 0 : i32
    %c0_i32_1 = arith.constant 0 : i32
    return %c0_i32, %c0_i32_0 : i32, i32
  }
  func.func @transform_5(%arg0: i32, %arg1: i32) -> (i32, i32) {
    %c0_i32 = arith.constant 0 : i32
    %c0_i32_0 = arith.constant 0 : i32
    %c0_i32_1 = arith.constant 0 : i32
    return %c0_i32, %c0_i32_0 : i32, i32
  }
  func.func @transform_6(%arg0: i32, %arg1: i32) -> (i32, i32) {
    %c0_i32 = arith.constant 0 : i32
    %c0_i32_0 = arith.constant 0 : i32
    %c0_i32_1 = arith.constant 0 : i32
    return %c0_i32, %c0_i32_0 : i32, i32
  }
  func.func @transform_7(%arg0: i32, %arg1: i32) -> (i32, i32) {
    %c0_i32 = arith.constant 0 : i32
    %c0_i32_0 = arith.constant 0 : i32
    return %arg0, %c0_i32 : i32, i32
  }
}

</mosaic_0001>

<llo_original>
// kernel: tpu_custom_call.1
$region0: #{tpu_custom_call.1}
  #allocation0 [shape = 'u32[]', space=smem, size = 0x4, offset = 0x4, fixed_abs, tag = 'smem constant byte address 0x4 - core index']
  #allocation1 [shape = 'u32[144,128]{1,0:T(1,128)}', space=vmem, size = 0x12000, scoped, tag = 'internal scratch']
  %s0 = inlined_call_operand.vmem [shape: f32[2,128,8], index: 0, kind: input, shape index: {}]
  %s1 = inlined_call_operand.vmem [shape: f32[8,64], index: 1, kind: input, shape index: {}]
  %s2 = inlined_call_operand.vmem [shape: f32[1,64], index: 2, kind: input, shape index: {}]
  %s3 = inlined_call_operand.vmem [shape: f32[64,128], index: 3, kind: input, shape index: {}]
  %s4 = inlined_call_operand.vmem [shape: f32[1,128], index: 4, kind: input, shape index: {}]
  %s5 = inlined_call_operand.hbm [shape: f32[128,1024], index: 5, kind: input, shape index: {}]
  %s6 = inlined_call_operand.vmem [shape: f32[1,1024], index: 6, kind: input, shape index: {}]
  %s7 = inlined_call_operand.hbm [shape: f32[2,1024], index: 7, kind: output, shape index: {}]
  %s8 = sld [smem:[#allocation0]]
  $region50: #{tpu_custom_call.1} parent=0
    _
  %s10 = ssub.s32 1, %s8
  %s11 = scalar_select 0, %s10, %s8
  $region1: #{tpu_custom_call.1} parent=0
    #allocation2 [shape = 'u8[524288]{0}', space=vmem, size = 0x80000, scoped, tag = 'input window, operand 5, single buffered']
    #allocation3 [shape = 's32[1]{0}', space=sflag, size = 0x4, scoped, tag = 'scoped memory for tpu_custom_call.1']
    #allocation4 [shape = 's32[1]{0}', space=sflag, size = 0x4, scoped, tag = 'scoped memory for tpu_custom_call.1']
    #allocation5 [shape = 'u8[8192]{0}', space=vmem, size = 0x2000, scoped, tag = 'output window, operand 0, single buffered']
    %12 = vsyncpa [#allocation3], 0
    %13 = vsyncpa [#allocation4], 0
    // Predicated region
    $region2: #{tpu_custom_call.1} parent=1 // pred_check
      _
    $region3: #{tpu_custom_call.1} parent=1 // pred_check_branch
      %15 = sbr.rel (0) target = $region5
    $region4: #{tpu_custom_call.1} parent=1 // pred_region
      _
    $region5: #{tpu_custom_call.1} parent=1 // pred_fallthru
      _
    // Predicated region
    $region6: #{tpu_custom_call.1} parent=1 // pred_check
      _
    $region7: #{tpu_custom_call.1} parent=1 // pred_check_branch
      %17 = sbr.rel (0) target = $region9
    $region8: #{tpu_custom_call.1} parent=1 // pred_region
      _
    $region9: #{tpu_custom_call.1} parent=1 // pred_fallthru
      _
    // Predicated region
    $region10: #{tpu_custom_call.1} parent=1 // pred_check
      _
    $region11: #{tpu_custom_call.1} parent=1 // pred_check_branch
      %19 = sbr.rel (0) target = $region13
    $region12: #{tpu_custom_call.1} parent=1 // pred_region
      _
    $region13: #{tpu_custom_call.1} parent=1 // pred_fallthru
      _
    // Predicated region
    $region14: #{tpu_custom_call.1} parent=1 // pred_check
      _
    $region15: #{tpu_custom_call.1} parent=1 // pred_check_branch
      %21 = sbr.rel (0) target = $region17
    $region16: #{tpu_custom_call.1} parent=1 // pred_region
      _
    $region17: #{tpu_custom_call.1} parent=1 // pred_fallthru
      _
    // Predicated region
    $region18: #{tpu_custom_call.1} parent=1 // pred_check
      _
    $region19: #{tpu_custom_call.1} parent=1 // pred_check_branch
      %23 = sbr.rel (0) target = $region21
    $region20: #{tpu_custom_call.1} parent=1 // pred_region
      _
    $region21: #{tpu_custom_call.1} parent=1 // pred_fallthru
      _
    // Predicated region
    $region22: #{tpu_custom_call.1} parent=1 // pred_check
      _
    $region23: #{tpu_custom_call.1} parent=1 // pred_check_branch
      %25 = sbr.rel (0) target = $region25
    $region24: #{tpu_custom_call.1} parent=1 // pred_region
      %s27 = ssub.s32 16384, 16384
      %28 = vsyncadd [#allocation3], %s27
      %s29 = sshll.u32 [#allocation2], 4
      %s30 = int_to_ptr.vmem [resolvable:$true] %s29
      %35 = dma.hbm_to_vmem [thread:$0]  %s5, 16384, %s30, [#allocation3], 1024, 1024, 64
    $region25: #{tpu_custom_call.1} parent=1 // pred_fallthru
      _
    // Predicated region
    $region26: #{tpu_custom_call.1} parent=1 // pred_check
      _
    $region27: #{tpu_custom_call.1} parent=1 // pred_check_branch
      %37 = sbr.rel (0) target = $region29
    $region28: #{tpu_custom_call.1} parent=1 // pred_region
      _
    $region29: #{tpu_custom_call.1} parent=1 // pred_fallthru
      _
    // Predicated region
    $region30: #{tpu_custom_call.1} parent=1 // pred_check
      _
    $region31: #{tpu_custom_call.1} parent=1 // pred_check_branch
      %39 = sbr.rel (0) target = $region33
    $region32: #{tpu_custom_call.1} parent=1 // pred_region
      %40 = dma.done [#allocation3], 16384
    $region33: #{tpu_custom_call.1} parent=1 // pred_fallthru
      _
    %v41 = vld [vmem:[%s0] sm:$0xff]
    %v42 = vld [vmem:[%s0 + $0x8] sm:$0xff]
    %v43 = vld [vmem:[%s0 + $0x10] sm:$0xff]
    %v44 = vld [vmem:[%s0 + $0x18] sm:$0xff]
    %v45 = vld [vmem:[%s0 + $0x20] sm:$0xff]
    %v46 = vld [vmem:[%s0 + $0x28] sm:$0xff]
    %v47 = vld [vmem:[%s0 + $0x30] sm:$0xff]
    %v48 = vld [vmem:[%s0 + $0x38] sm:$0xff]
    %v49 = vld [vmem:[%s0 + $0x40] sm:$0xff]
    %v50 = vld [vmem:[%s0 + $0x48] sm:$0xff]
    %v51 = vld [vmem:[%s0 + $0x50] sm:$0xff]
    %v52 = vld [vmem:[%s0 + $0x58] sm:$0xff]
    %v53 = vld [vmem:[%s0 + $0x60] sm:$0xff]
    %v54 = vld [vmem:[%s0 + $0x68] sm:$0xff]
    %v55 = vld [vmem:[%s0 + $0x70] sm:$0xff]
    %v56 = vld [vmem:[%s0 + $0x78] sm:$0xff]
    %v57 = vld [vmem:[%s0 + $0x80] sm:$0xff]
    %v58 = vld [vmem:[%s0 + $0x88] sm:$0xff]
    %v59 = vld [vmem:[%s0 + $0x90] sm:$0xff]
    %v60 = vld [vmem:[%s0 + $0x98] sm:$0xff]
    %v61 = vld [vmem:[%s0 + $0xa0] sm:$0xff]
    %v62 = vld [vmem:[%s0 + $0xa8] sm:$0xff]
    %v63 = vld [vmem:[%s0 + $0xb0] sm:$0xff]
    %v64 = vld [vmem:[%s0 + $0xb8] sm:$0xff]
    %v65 = vld [vmem:[%s0 + $0xc0] sm:$0xff]
    %v66 = vld [vmem:[%s0 + $0xc8] sm:$0xff]
    %v67 = vld [vmem:[%s0 + $0xd0] sm:$0xff]
    %v68 = vld [vmem:[%s0 + $0xd8] sm:$0xff]
    %v69 = vld [vmem:[%s0 + $0xe0] sm:$0xff]
    %v70 = vld [vmem:[%s0 + $0xe8] sm:$0xff]
    %v71 = vld [vmem:[%s0 + $0xf0] sm:$0xff]
    %v72 = vld [vmem:[%s0 + $0xf8] sm:$0xff]
    %v73 = vld [vmem:[%s1] sm:$0xff]
    %v74 = vld [vmem:[%s2] sm:$0x1]
    %v76 = vlaneseq
    %v77 = vshrl.u32 %v76, 7
    %v78 = vsub.s32 0, %v77
    %v79 = vrot.slane %v74, %v78
    %vm81 = vcmask 64512
    %v83 = vsel %vm81, %v41, 0
    %v86 = vsel %vm81, %v42, 0
    %v89 = vsel %vm81, %v43, 0
    %v92 = vsel %vm81, %v44, 0
    %v95 = vsel %vm81, %v45, 0
    %v98 = vsel %vm81, %v46, 0
    %v101 = vsel %vm81, %v47, 0
    %v104 = vsel %vm81, %v48, 0
    %v107 = vsel %vm81, %v49, 0
    %v110 = vsel %vm81, %v50, 0
    %v113 = vsel %vm81, %v51, 0
    %v116 = vsel %vm81, %v52, 0
    %v119 = vsel %vm81, %v53, 0
    %v122 = vsel %vm81, %v54, 0
    %v125 = vsel %vm81, %v55, 0
    %v128 = vsel %vm81, %v56, 0
    %v131 = vsel %vm81, %v57, 0
    %v134 = vsel %vm81, %v58, 0
    %v137 = vsel %vm81, %v59, 0
    %v140 = vsel %vm81, %v60, 0
    %v143 = vsel %vm81, %v61, 0
    %v146 = vsel %vm81, %v62, 0
    %v149 = vsel %vm81, %v63, 0
    %v152 = vsel %vm81, %v64, 0
    %v155 = vsel %vm81, %v65, 0
    %v158 = vsel %vm81, %v66, 0
    %v161 = vsel %vm81, %v67, 0
    %v164 = vsel %vm81, %v68, 0
    %v167 = vsel %vm81, %v69, 0
    %v170 = vsel %vm81, %v70, 0
    %v173 = vsel %vm81, %v71, 0
    %v176 = vsel %vm81, %v72, 0
    %178 = vmatprep.subr.mxu0 0.0
    %179 = vmatpush1.msra.mxu0 %v73
    %180 = vmatprep.subr.mxu0 0.0
    %181 = vmatpush1.msra.mxu0 0.0
    %182 = vmatprep.subr.mxu0 0.0
    %183 = vmatpush1.msra.mxu0 0.0
    %184 = vmatprep.subr.mxu0 0.0
    %185 = vmatpush1.msra.mxu0 0.0
    %186 = vmatprep.subr.mxu0 0.0
    %187 = vmatpush1.msra.mxu0 0.0
    %188 = vmatprep.subr.mxu0 0.0
    %189 = vmatpush1.msra.mxu0 0.0
    %190 = vmatprep.subr.mxu0 0.0
    %191 = vmatpush1.msra.mxu0 0.0
    %192 = vmatprep.subr.mxu0 0.0
    %193 = vmatpush1.msra.mxu0 0.0
    %194 = vmatprep.subr.mxu0 0.0
    %195 = vmatpush1.msra.mxu0 0.0
    %196 = vmatprep.subr.mxu0 0.0
    %197 = vmatpush1.msra.mxu0 0.0
    %198 = vmatprep.subr.mxu0 0.0
    %199 = vmatpush1.msra.mxu0 0.0
    %200 = vmatprep.subr.mxu0 0.0
    %201 = vmatpush1.msra.mxu0 0.0
    %202 = vmatprep.subr.mxu0 0.0
    %203 = vmatpush1.msra.mxu0 0.0
    %204 = vmatprep.subr.mxu0 0.0
    %205 = vmatpush1.msra.mxu0 0.0
    %206 = vmatprep.subr.mxu0 0.0
    %207 = vmatpush1.msra.mxu0 0.0
    %208 = vmatprep.subr.mxu0 0.0
    %209 = vmatpush1.msra.mxu0 0.0
    %210 = vmatprep.subr.mxu0 0.0
    %211 = vmatpush1.msra.mxu0 0.0
    %212 = vmatprep.subr.mxu0 0.0
    %213 = vmatpush1.msra.mxu0 0.0
    %214 = vmatprep.subr.mxu0 0.0
    %215 = vmatpush1.msra.mxu0 0.0
    %216 = vmatprep.subr.mxu0 0.0
    %217 = vmatpush1.msra.mxu0 0.0
    %218 = vmatprep.subr.mxu0 0.0
    %219 = vmatpush1.msra.mxu0 0.0
    %220 = vmatprep.subr.mxu0 0.0
    %221 = vmatpush1.msra.mxu0 0.0
    %222 = vmatprep.subr.mxu0 0.0
    %223 = vmatpush1.msra.mxu0 0.0
    %224 = vmatprep.subr.mxu0 0.0
    %225 = vmatpush1.msra.mxu0 0.0
    %226 = vmatprep.subr.mxu0 0.0
    %227 = vmatpush1.msra.mxu0 0.0
    %228 = vmatprep.subr.mxu0 0.0
    %229 = vmatpush1.msra.mxu0 0.0
    %230 = vmatprep.subr.mxu0 0.0
    %231 = vmatpush1.msra.mxu0 0.0
    %232 = vmatprep.subr.mxu0 0.0
    %233 = vmatpush1.msra.mxu0 0.0
    %234 = vmatprep.subr.mxu0 0.0
    %235 = vmatpush1.msra.mxu0 0.0
    %236 = vmatprep.subr.mxu0 0.0
    %237 = vmatpush1.msra.mxu0 0.0
    %238 = vmatprep.subr.mxu0 0.0
    %239 = vmatpush1.msra.mxu0 0.0
    %240 = vmatprep.subr.mxu0 0.0
    %241 = vmatpush1.msra.mxu0 0.0
    %242 = vmatprep.mubr.f32.mxu0 0.0
    %243 = vmatmul.mubr.f32.gmra.mrb[0].mxu0 %v83
    %v244 = vpop.f32.mrb[0].mxu0
    %v245 = vadd.f32 %v79, %v244
    %v246 = vpop.f32.mrb[0].mxu0
    %247 = vmatprep.mubr.f32.mxu0 0.0
    %248 = vmatmul.mubr.f32.gmra.mrb[0].mxu0 %v86
    %v249 = vpop.f32.mrb[0].mxu0
    %v250 = vadd.f32 %v79, %v249
    %v251 = vpop.f32.mrb[0].mxu0
    %252 = vmatprep.mubr.f32.mxu0 0.0
    %253 = vmatmul.mubr.f32.gmra.mrb[0].mxu0 %v89
    %v254 = vpop.f32.mrb[0].mxu0
    %v255 = vadd.f32 %v79, %v254
    %v256 = vpop.f32.mrb[0].mxu0
    %257 = vmatprep.mubr.f32.mxu0 0.0
    %258 = vmatmul.mubr.f32.gmra.mrb[0].mxu0 %v92
    %v259 = vpop.f32.mrb[0].mxu0
    %v260 = vadd.f32 %v79, %v259
    %v261 = vpop.f32.mrb[0].mxu0
    %262 = vmatprep.mubr.f32.mxu0 0.0
    %263 = vmatmul.mubr.f32.gmra.mrb[0].mxu0 %v95
    %v264 = vpop.f32.mrb[0].mxu0
    %v265 = vadd.f32 %v79, %v264
    %v266 = vpop.f32.mrb[0].mxu0
    %267 = vmatprep.mubr.f32.mxu0 0.0
    %268 = vmatmul.mubr.f32.gmra.mrb[0].mxu0 %v98
    %v269 = vpop.f32.mrb[0].mxu0
    %v270 = vadd.f32 %v79, %v269
    %v271 = vpop.f32.mrb[0].mxu0
    %272 = vmatprep.mubr.f32.mxu0 0.0
    %273 = vmatmul.mubr.f32.gmra.mrb[0].mxu0 %v101
    %v274 = vpop.f32.mrb[0].mxu0
    %v275 = vadd.f32 %v79, %v274
    %v276 = vpop.f32.mrb[0].mxu0
    %277 = vmatprep.mubr.f32.mxu0 0.0
    %278 = vmatmul.mubr.f32.gmra.mrb[0].mxu0 %v104
    %v279 = vpop.f32.mrb[0].mxu0
    %v280 = vadd.f32 %v79, %v279
    %v281 = vpop.f32.mrb[0].mxu0
    %282 = vmatprep.mubr.f32.mxu0 0.0
    %283 = vmatmul.mubr.f32.gmra.mrb[0].mxu0 %v107
    %v284 = vpop.f32.mrb[0].mxu0
    %v285 = vadd.f32 %v79, %v284
    %v286 = vpop.f32.mrb[0].mxu0
    %287 = vmatprep.mubr.f32.mxu0 0.0
    %288 = vmatmul.mubr.f32.gmra.mrb[0].mxu0 %v110
    %v289 = vpop.f32.mrb[0].mxu0
    %v290 = vadd.f32 %v79, %v289
    %v291 = vpop.f32.mrb[0].mxu0
    %292 = vmatprep.mubr.f32.mxu0 0.0
    %293 = vmatmul.mubr.f32.gmra.mrb[0].mxu0 %v113
    %v294 = vpop.f32.mrb[0].mxu0
    %v295 = vadd.f32 %v79, %v294
    %v296 = vpop.f32.mrb[0].mxu0
    %297 = vmatprep.mubr.f32.mxu0 0.0
    %298 = vmatmul.mubr.f32.gmra.mrb[0].mxu0 %v116
    %v299 = vpop.f32.mrb[0].mxu0
    %v300 = vadd.f32 %v79, %v299
    %v301 = vpop.f32.mrb[0].mxu0
    %302 = vmatprep.mubr.f32.mxu0 0.0
    %303 = vmatmul.mubr.f32.gmra.mrb[0].mxu0 %v119
    %v304 = vpop.f32.mrb[0].mxu0
    %v305 = vadd.f32 %v79, %v304
    %v306 = vpop.f32.mrb[0].mxu0
    %307 = vmatprep.mubr.f32.mxu0 0.0
    %308 = vmatmul.mubr.f32.gmra.mrb[0].mxu0 %v122
    %v309 = vpop.f32.mrb[0].mxu0
    %v310 = vadd.f32 %v79, %v309
    %v311 = vpop.f32.mrb[0].mxu0
    %312 = vmatprep.mubr.f32.mxu0 0.0
    %313 = vmatmul.mubr.f32.gmra.mrb[0].mxu0 %v125
    %v314 = vpop.f32.mrb[0].mxu0
    %v315 = vadd.f32 %v79, %v314
    %v316 = vpop.f32.mrb[0].mxu0
    %317 = vmatprep.mubr.f32.mxu0 0.0
    %318 = vmatmul.mubr.f32.gmra.mrb[0].mxu0 %v128
    %v319 = vpop.f32.mrb[0].mxu0
    %v320 = vadd.f32 %v79, %v319
    %v321 = vpop.f32.mrb[0].mxu0
    %322 = vmatprep.mubr.f32.mxu0 0.0
    %323 = vmatmul.mubr.f32.gmra.mrb[0].mxu0 %v131
    %v324 = vpop.f32.mrb[0].mxu0
    %v325 = vadd.f32 %v79, %v324
    %v326 = vpop.f32.mrb[0].mxu0
    %327 = vmatprep.mubr.f32.mxu0 0.0
    %328 = vmatmul.mubr.f32.gmra.mrb[0].mxu0 %v134
    %v329 = vpop.f32.mrb[0].mxu0
    %v330 = vadd.f32 %v79, %v329
    %v331 = vpop.f32.mrb[0].mxu0
    %332 = vmatprep.mubr.f32.mxu0 0.0
    %333 = vmatmul.mubr.f32.gmra.mrb[0].mxu0 %v137
    %v334 = vpop.f32.mrb[0].mxu0
    %v335 = vadd.f32 %v79, %v334
    %v336 = vpop.f32.mrb[0].mxu0
    %337 = vmatprep.mubr.f32.mxu0 0.0
    %338 = vmatmul.mubr.f32.gmra.mrb[0].mxu0 %v140
    %v339 = vpop.f32.mrb[0].mxu0
    %v340 = vadd.f32 %v79, %v339
    %v341 = vpop.f32.mrb[0].mxu0
    %342 = vmatprep.mubr.f32.mxu0 0.0
    %343 = vmatmul.mubr.f32.gmra.mrb[0].mxu0 %v143
    %v344 = vpop.f32.mrb[0].mxu0
    %v345 = vadd.f32 %v79, %v344
    %v346 = vpop.f32.mrb[0].mxu0
    %347 = vmatprep.mubr.f32.mxu0 0.0
    %348 = vmatmul.mubr.f32.gmra.mrb[0].mxu0 %v146
    %v349 = vpop.f32.mrb[0].mxu0
    %v350 = vadd.f32 %v79, %v349
    %v351 = vpop.f32.mrb[0].mxu0
    %352 = vmatprep.mubr.f32.mxu0 0.0
    %353 = vmatmul.mubr.f32.gmra.mrb[0].mxu0 %v149
    %v354 = vpop.f32.mrb[0].mxu0
    %v355 = vadd.f32 %v79, %v354
    %v356 = vpop.f32.mrb[0].mxu0
    %357 = vmatprep.mubr.f32.mxu0 0.0
    %358 = vmatmul.mubr.f32.gmra.mrb[0].mxu0 %v152
    %v359 = vpop.f32.mrb[0].mxu0
    %v360 = vadd.f32 %v79, %v359
    %v361 = vpop.f32.mrb[0].mxu0
    %362 = vmatprep.mubr.f32.mxu0 0.0
    %363 = vmatmul.mubr.f32.gmra.mrb[0].mxu0 %v155
    %v364 = vpop.f32.mrb[0].mxu0
    %v365 = vadd.f32 %v79, %v364
    %v366 = vpop.f32.mrb[0].mxu0
    %367 = vmatprep.mubr.f32.mxu0 0.0
    %368 = vmatmul.mubr.f32.gmra.mrb[0].mxu0 %v158
    %v369 = vpop.f32.mrb[0].mxu0
    %v370 = vadd.f32 %v79, %v369
    %v371 = vpop.f32.mrb[0].mxu0
    %372 = vmatprep.mubr.f32.mxu0 0.0
    %373 = vmatmul.mubr.f32.gmra.mrb[0].mxu0 %v161
    %v374 = vpop.f32.mrb[0].mxu0
    %v375 = vadd.f32 %v79, %v374
    %v376 = vpop.f32.mrb[0].mxu0
    %377 = vmatprep.mubr.f32.mxu0 0.0
    %378 = vmatmul.mubr.f32.gmra.mrb[0].mxu0 %v164
    %v379 = vpop.f32.mrb[0].mxu0
    %v380 = vadd.f32 %v79, %v379
    %v381 = vpop.f32.mrb[0].mxu0
    %382 = vmatprep.mubr.f32.mxu0 0.0
    %383 = vmatmul.mubr.f32.gmra.mrb[0].mxu0 %v167
    %v384 = vpop.f32.mrb[0].mxu0
    %v385 = vadd.f32 %v79, %v384
    %v386 = vpop.f32.mrb[0].mxu0
    %387 = vmatprep.mubr.f32.mxu0 0.0
    %388 = vmatmul.mubr.f32.gmra.mrb[0].mxu0 %v170
    %v389 = vpop.f32.mrb[0].mxu0
    %v390 = vadd.f32 %v79, %v389
    %v391 = vpop.f32.mrb[0].mxu0
    %392 = vmatprep.mubr.f32.mxu0 0.0
    %393 = vmatmul.mubr.f32.gmra.mrb[0].mxu0 %v173
    %v394 = vpop.f32.mrb[0].mxu0
    %v395 = vadd.f32 %v79, %v394
    %v396 = vpop.f32.mrb[0].mxu0
    %397 = vmatprep.mubr.f32.mxu0 0.0
    %398 = vmatmul.mubr.f32.gmra.mrb[0].mxu0 %v176
    %v399 = vpop.f32.mrb[0].mxu0
    %v400 = vadd.f32 %v79, %v399
    %v401 = vpop.f32.mrb[0].mxu0
    %402 = vdwg.mxu0
    %v403 = vmax.f32 %v245, 0.0
    %v404 = vmax.f32 %v250, 0.0
    %v405 = vmax.f32 %v255, 0.0
    %v406 = vmax.f32 %v260, 0.0
    %v407 = vmax.f32 %v265, 0.0
    %v408 = vmax.f32 %v270, 0.0
    %v409 = vmax.f32 %v275, 0.0
    %v410 = vmax.f32 %v280, 0.0
    %v411 = vmax.f32 %v285, 0.0
    %v412 = vmax.f32 %v290, 0.0
    %v413 = vmax.f32 %v295, 0.0
    %v414 = vmax.f32 %v300, 0.0
    %v415 = vmax.f32 %v305, 0.0
    %v416 = vmax.f32 %v310, 0.0
    %v417 = vmax.f32 %v315, 0.0
    %v418 = vmax.f32 %v320, 0.0
    %v419 = vmax.f32 %v325, 0.0
    %v420 = vmax.f32 %v330, 0.0
    %v421 = vmax.f32 %v335, 0.0
    %v422 = vmax.f32 %v340, 0.0
    %v423 = vmax.f32 %v345, 0.0
    %v424 = vmax.f32 %v350, 0.0
    %v425 = vmax.f32 %v355, 0.0
    %v426 = vmax.f32 %v360, 0.0
    %v427 = vmax.f32 %v365, 0.0
    %v428 = vmax.f32 %v370, 0.0
    %v429 = vmax.f32 %v375, 0.0
    %v430 = vmax.f32 %v380, 0.0
    %v431 = vmax.f32 %v385, 0.0
    %v432 = vmax.f32 %v390, 0.0
    %v433 = vmax.f32 %v395, 0.0
    %v434 = vmax.f32 %v400, 0.0
    %v435 = vld [vmem:[%s3] sm:$0xff]
    %v436 = vld [vmem:[%s3 + $0x8] sm:$0xff]
    %v437 = vld [vmem:[%s3 + $0x10] sm:$0xff]
    %v438 = vld [vmem:[%s3 + $0x18] sm:$0xff]
    %v439 = vld [vmem:[%s3 + $0x20] sm:$0xff]
    %v440 = vld [vmem:[%s3 + $0x28] sm:$0xff]
    %v441 = vld [vmem:[%s3 + $0x30] sm:$0xff]
    %v442 = vld [vmem:[%s3 + $0x38] sm:$0xff]
    %v443 = vld [vmem:[%s4] sm:$0x1]
    %v445 = vlaneseq
    %v446 = vshrl.u32 %v445, 7
    %v447 = vsub.s32 0, %v446
    %v448 = vrot.slane %v443, %v447
    %vm450 = vcmask 523264
    %v452 = vsel %vm450, %v403, 0
    %v455 = vsel %vm450, %v404, 0
    %v458 = vsel %vm450, %v405, 0
    %v461 = vsel %vm450, %v406, 0
    %v464 = vsel %vm450, %v407, 0
    %v467 = vsel %vm450, %v408, 0
    %v470 = vsel %vm450, %v409, 0
    %v473 = vsel %vm450, %v410, 0
    %v476 = vsel %vm450, %v411, 0
    %v479 = vsel %vm450, %v412, 0
    %v482 = vsel %vm450, %v413, 0
    %v485 = vsel %vm450, %v414, 0
    %v488 = vsel %vm450, %v415, 0
    %v491 = vsel %vm450, %v416, 0
    %v494 = vsel %vm450, %v417, 0
    %v497 = vsel %vm450, %v418, 0
    %v500 = vsel %vm450, %v419, 0
    %v503 = vsel %vm450, %v420, 0
    %v506 = vsel %vm450, %v421, 0
    %v509 = vsel %vm450, %v422, 0
    %v512 = vsel %vm450, %v423, 0
    %v515 = vsel %vm450, %v424, 0
    %v518 = vsel %vm450, %v425, 0
    %v521 = vsel %vm450, %v426, 0
    %v524 = vsel %vm450, %v427, 0
    %v527 = vsel %vm450, %v428, 0
    %v530 = vsel %vm450, %v429, 0
    %v533 = vsel %vm450, %v430, 0
    %v536 = vsel %vm450, %v431, 0
    %v539 = vsel %vm450, %v432, 0
    %v542 = vsel %vm450, %v433, 0
    %v545 = vsel %vm450, %v434, 0
    %547 = vmatprep.subr.mxu0 0.0
    %548 = vmatpush1.msra.mxu0 %v435
    %549 = vmatprep.subr.mxu0 0.0
    %550 = vmatpush1.msra.mxu0 %v436
    %551 = vmatprep.subr.mxu0 0.0
    %552 = vmatpush1.msra.mxu0 %v437
    %553 = vmatprep.subr.mxu0 0.0
    %554 = vmatpush1.msra.mxu0 %v438
    %555 = vmatprep.subr.mxu0 0.0
    %556 = vmatpush1.msra.mxu0 %v439
    %557 = vmatprep.subr.mxu0 0.0
    %558 = vmatpush1.msra.mxu0 %v440
    %559 = vmatprep.subr.mxu0 0.0
    %560 = vmatpush1.msra.mxu0 %v441
    %561 = vmatprep.subr.mxu0 0.0
    %562 = vmatpush1.msra.mxu0 %v442
    %563 = vmatprep.subr.mxu0 0.0
    %564 = vmatpush1.msra.mxu0 0.0
    %565 = vmatprep.subr.mxu0 0.0
    %566 = vmatpush1.msra.mxu0 0.0
    %567 = vmatprep.subr.mxu0 0.0
    %568 = vmatpush1.msra.mxu0 0.0
    %569 = vmatprep.subr.mxu0 0.0
    %570 = vmatpush1.msra.mxu0 0.0
    %571 = vmatprep.subr.mxu0 0.0
    %572 = vmatpush1.msra.mxu0 0.0
    %573 = vmatprep.subr.mxu0 0.0
    %574 = vmatpush1.msra.mxu0 0.0
    %575 = vmatprep.subr.mxu0 0.0
    %576 = vmatpush1.msra.mxu0 0.0
    %577 = vmatprep.subr.mxu0 0.0
    %578 = vmatpush1.msra.mxu0 0.0
    %579 = vmatprep.subr.mxu0 0.0
    %580 = vmatpush1.msra.mxu0 0.0
    %581 = vmatprep.subr.mxu0 0.0
    %582 = vmatpush1.msra.mxu0 0.0
    %583 = vmatprep.subr.mxu0 0.0
    %584 = vmatpush1.msra.mxu0 0.0
    %585 = vmatprep.subr.mxu0 0.0
    %586 = vmatpush1.msra.mxu0 0.0
    %587 = vmatprep.subr.mxu0 0.0
    %588 = vmatpush1.msra.mxu0 0.0
    %589 = vmatprep.subr.mxu0 0.0
    %590 = vmatpush1.msra.mxu0 0.0
    %591 = vmatprep.subr.mxu0 0.0
    %592 = vmatpush1.msra.mxu0 0.0
    %593 = vmatprep.subr.mxu0 0.0
    %594 = vmatpush1.msra.mxu0 0.0
    %595 = vmatprep.subr.mxu0 0.0
    %596 = vmatpush1.msra.mxu0 0.0
    %597 = vmatprep.subr.mxu0 0.0
    %598 = vmatpush1.msra.mxu0 0.0
    %599 = vmatprep.subr.mxu0 0.0
    %600 = vmatpush1.msra.mxu0 0.0
    %601 = vmatprep.subr.mxu0 0.0
    %602 = vmatpush1.msra.mxu0 0.0
    %603 = vmatprep.subr.mxu0 0.0
    %604 = vmatpush1.msra.mxu0 0.0
    %605 = vmatprep.subr.mxu0 0.0
    %606 = vmatpush1.msra.mxu0 0.0
    %607 = vmatprep.subr.mxu0 0.0
    %608 = vmatpush1.msra.mxu0 0.0
    %609 = vmatprep.subr.mxu0 0.0
    %610 = vmatpush1.msra.mxu0 0.0
    %611 = vmatprep.mubr.f32.mxu0 0.0
    %612 = vmatmul.mubr.f32.gmra.mrb[0].mxu0 %v452
    %v613 = vpop.f32.mrb[0].mxu0
    %v614 = vadd.f32 %v448, %v613
    %v615 = vpop.f32.mrb[0].mxu0
    %616 = vmatprep.mubr.f32.mxu0 0.0
    %617 = vmatmul.mubr.f32.gmra.mrb[0].mxu0 %v455
    %v618 = vpop.f32.mrb[0].mxu0
    %v619 = vadd.f32 %v448, %v618
    %v620 = vpop.f32.mrb[0].mxu0
    %621 = vmatprep.mubr.f32.mxu0 0.0
    %622 = vmatmul.mubr.f32.gmra.mrb[0].mxu0 %v458
    %v623 = vpop.f32.mrb[0].mxu0
    %v624 = vadd.f32 %v448, %v623
    %v625 = vpop.f32.mrb[0].mxu0
    %626 = vmatprep.mubr.f32.mxu0 0.0
    %627 = vmatmul.mubr.f32.gmra.mrb[0].mxu0 %v461
    %v628 = vpop.f32.mrb[0].mxu0
    %v629 = vadd.f32 %v448, %v628
    %v630 = vpop.f32.mrb[0].mxu0
    %631 = vmatprep.mubr.f32.mxu0 0.0
    %632 = vmatmul.mubr.f32.gmra.mrb[0].mxu0 %v464
    %v633 = vpop.f32.mrb[0].mxu0
    %v634 = vadd.f32 %v448, %v633
    %v635 = vpop.f32.mrb[0].mxu0
    %636 = vmatprep.mubr.f32.mxu0 0.0
    %637 = vmatmul.mubr.f32.gmra.mrb[0].mxu0 %v467
    %v638 = vpop.f32.mrb[0].mxu0
    %v639 = vadd.f32 %v448, %v638
    %v640 = vpop.f32.mrb[0].mxu0
    %641 = vmatprep.mubr.f32.mxu0 0.0
    %642 = vmatmul.mubr.f32.gmra.mrb[0].mxu0 %v470
    %v643 = vpop.f32.mrb[0].mxu0
    %v644 = vadd.f32 %v448, %v643
    %v645 = vpop.f32.mrb[0].mxu0
    %646 = vmatprep.mubr.f32.mxu0 0.0
    %647 = vmatmul.mubr.f32.gmra.mrb[0].mxu0 %v473
    %v648 = vpop.f32.mrb[0].mxu0
    %v649 = vadd.f32 %v448, %v648
    %v650 = vpop.f32.mrb[0].mxu0
    %651 = vmatprep.mubr.f32.mxu0 0.0
    %652 = vmatmul.mubr.f32.gmra.mrb[0].mxu0 %v476
    %v653 = vpop.f32.mrb[0].mxu0
    %v654 = vadd.f32 %v448, %v653
    %v655 = vpop.f32.mrb[0].mxu0
    %656 = vmatprep.mubr.f32.mxu0 0.0
    %657 = vmatmul.mubr.f32.gmra.mrb[0].mxu0 %v479
    %v658 = vpop.f32.mrb[0].mxu0
    %v659 = vadd.f32 %v448, %v658
    %v660 = vpop.f32.mrb[0].mxu0
    %661 = vmatprep.mubr.f32.mxu0 0.0
    %662 = vmatmul.mubr.f32.gmra.mrb[0].mxu0 %v482
    %v663 = vpop.f32.mrb[0].mxu0
    %v664 = vadd.f32 %v448, %v663
    %v665 = vpop.f32.mrb[0].mxu0
    %666 = vmatprep.mubr.f32.mxu0 0.0
    %667 = vmatmul.mubr.f32.gmra.mrb[0].mxu0 %v485
    %v668 = vpop.f32.mrb[0].mxu0
    %v669 = vadd.f32 %v448, %v668
    %v670 = vpop.f32.mrb[0].mxu0
    %671 = vmatprep.mubr.f32.mxu0 0.0
    %672 = vmatmul.mubr.f32.gmra.mrb[0].mxu0 %v488
    %v673 = vpop.f32.mrb[0].mxu0
    %v674 = vadd.f32 %v448, %v673
    %v675 = vpop.f32.mrb[0].mxu0
    %676 = vmatprep.mubr.f32.mxu0 0.0
    %677 = vmatmul.mubr.f32.gmra.mrb[0].mxu0 %v491
    %v678 = vpop.f32.mrb[0].mxu0
    %v679 = vadd.f32 %v448, %v678
    %v680 = vpop.f32.mrb[0].mxu0
    %681 = vmatprep.mubr.f32.mxu0 0.0
    %682 = vmatmul.mubr.f32.gmra.mrb[0].mxu0 %v494
    %v683 = vpop.f32.mrb[0].mxu0
    %v684 = vadd.f32 %v448, %v683
    %v685 = vpop.f32.mrb[0].mxu0
    %686 = vmatprep.mubr.f32.mxu0 0.0
    %687 = vmatmul.mubr.f32.gmra.mrb[0].mxu0 %v497
    %v688 = vpop.f32.mrb[0].mxu0
    %v689 = vadd.f32 %v448, %v688
    %v690 = vpop.f32.mrb[0].mxu0
    %691 = vmatprep.mubr.f32.mxu0 0.0
    %692 = vmatmul.mubr.f32.gmra.mrb[0].mxu0 %v500
    %v693 = vpop.f32.mrb[0].mxu0
    %v694 = vadd.f32 %v448, %v693
    %v695 = vpop.f32.mrb[0].mxu0
    %696 = vmatprep.mubr.f32.mxu0 0.0
    %697 = vmatmul.mubr.f32.gmra.mrb[0].mxu0 %v503
    %v698 = vpop.f32.mrb[0].mxu0
    %v699 = vadd.f32 %v448, %v698
    %v700 = vpop.f32.mrb[0].mxu0
    %701 = vmatprep.mubr.f32.mxu0 0.0
    %702 = vmatmul.mubr.f32.gmra.mrb[0].mxu0 %v506
    %v703 = vpop.f32.mrb[0].mxu0
    %v704 = vadd.f32 %v448, %v703
    %v705 = vpop.f32.mrb[0].mxu0
    %706 = vmatprep.mubr.f32.mxu0 0.0
    %707 = vmatmul.mubr.f32.gmra.mrb[0].mxu0 %v509
    %v708 = vpop.f32.mrb[0].mxu0
    %v709 = vadd.f32 %v448, %v708
    %v710 = vpop.f32.mrb[0].mxu0
    %711 = vmatprep.mubr.f32.mxu0 0.0
    %712 = vmatmul.mubr.f32.gmra.mrb[0].mxu0 %v512
    %v713 = vpop.f32.mrb[0].mxu0
    %v714 = vadd.f32 %v448, %v713
    %v715 = vpop.f32.mrb[0].mxu0
    %716 = vmatprep.mubr.f32.mxu0 0.0
    %717 = vmatmul.mubr.f32.gmra.mrb[0].mxu0 %v515
    %v718 = vpop.f32.mrb[0].mxu0
    %v719 = vadd.f32 %v448, %v718
    %v720 = vpop.f32.mrb[0].mxu0
    %721 = vmatprep.mubr.f32.mxu0 0.0
    %722 = vmatmul.mubr.f32.gmra.mrb[0].mxu0 %v518
    %v723 = vpop.f32.mrb[0].mxu0
    %v724 = vadd.f32 %v448, %v723
    %v725 = vpop.f32.mrb[0].mxu0
    %726 = vmatprep.mubr.f32.mxu0 0.0
    %727 = vmatmul.mubr.f32.gmra.mrb[0].mxu0 %v521
    %v728 = vpop.f32.mrb[0].mxu0
    %v729 = vadd.f32 %v448, %v728
    %v730 = vpop.f32.mrb[0].mxu0
    %731 = vmatprep.mubr.f32.mxu0 0.0
    %732 = vmatmul.mubr.f32.gmra.mrb[0].mxu0 %v524
    %v733 = vpop.f32.mrb[0].mxu0
    %v734 = vadd.f32 %v448, %v733
    %v735 = vpop.f32.mrb[0].mxu0
    %736 = vmatprep.mubr.f32.mxu0 0.0
    %737 = vmatmul.mubr.f32.gmra.mrb[0].mxu0 %v527
    %v738 = vpop.f32.mrb[0].mxu0
    %v739 = vadd.f32 %v448, %v738
    %v740 = vpop.f32.mrb[0].mxu0
    %741 = vmatprep.mubr.f32.mxu0 0.0
    %742 = vmatmul.mubr.f32.gmra.mrb[0].mxu0 %v530
    %v743 = vpop.f32.mrb[0].mxu0
    %v744 = vadd.f32 %v448, %v743
    %v745 = vpop.f32.mrb[0].mxu0
    %746 = vmatprep.mubr.f32.mxu0 0.0
    %747 = vmatmul.mubr.f32.gmra.mrb[0].mxu0 %v533
    %v748 = vpop.f32.mrb[0].mxu0
    %v749 = vadd.f32 %v448, %v748
    %v750 = vpop.f32.mrb[0].mxu0
    %751 = vmatprep.mubr.f32.mxu0 0.0
    %752 = vmatmul.mubr.f32.gmra.mrb[0].mxu0 %v536
    %v753 = vpop.f32.mrb[0].mxu0
    %v754 = vadd.f32 %v448, %v753
    %v755 = vpop.f32.mrb[0].mxu0
    %756 = vmatprep.mubr.f32.mxu0 0.0
    %757 = vmatmul.mubr.f32.gmra.mrb[0].mxu0 %v539
    %v758 = vpop.f32.mrb[0].mxu0
    %v759 = vadd.f32 %v448, %v758
    %v760 = vpop.f32.mrb[0].mxu0
    %761 = vmatprep.mubr.f32.mxu0 0.0
    %762 = vmatmul.mubr.f32.gmra.mrb[0].mxu0 %v542
    %v763 = vpop.f32.mrb[0].mxu0
    %v764 = vadd.f32 %v448, %v763
    %v765 = vpop.f32.mrb[0].mxu0
    %766 = vmatprep.mubr.f32.mxu0 0.0
    %767 = vmatmul.mubr.f32.gmra.mrb[0].mxu0 %v545
    %v768 = vpop.f32.mrb[0].mxu0
    %v769 = vadd.f32 %v448, %v768
    %v770 = vpop.f32.mrb[0].mxu0
    %771 = vdwg.mxu0
    %v772 = vmax.f32 %v614, 0.0
    %v773 = vmax.f32 %v619, 0.0
    %v774 = vmax.f32 %v624, 0.0
    %v775 = vmax.f32 %v629, 0.0
    %v776 = vmax.f32 %v634, 0.0
    %v777 = vmax.f32 %v639, 0.0
    %v778 = vmax.f32 %v644, 0.0
    %v779 = vmax.f32 %v649, 0.0
    %v780 = vmax.f32 %v654, 0.0
    %v781 = vmax.f32 %v659, 0.0
    %v782 = vmax.f32 %v664, 0.0
    %v783 = vmax.f32 %v669, 0.0
    %v784 = vmax.f32 %v674, 0.0
    %v785 = vmax.f32 %v679, 0.0
    %v786 = vmax.f32 %v684, 0.0
    %v787 = vmax.f32 %v689, 0.0
    %v788 = vmax.f32 %v694, 0.0
    %v789 = vmax.f32 %v699, 0.0
    %v790 = vmax.f32 %v704, 0.0
    %v791 = vmax.f32 %v709, 0.0
    %v792 = vmax.f32 %v714, 0.0
    %v793 = vmax.f32 %v719, 0.0
    %v794 = vmax.f32 %v724, 0.0
    %v795 = vmax.f32 %v729, 0.0
    %v796 = vmax.f32 %v734, 0.0
    %v797 = vmax.f32 %v739, 0.0
    %v798 = vmax.f32 %v744, 0.0
    %v799 = vmax.f32 %v749, 0.0
    %v800 = vmax.f32 %v754, 0.0
    %v801 = vmax.f32 %v759, 0.0
    %v802 = vmax.f32 %v764, 0.0
    %v803 = vmax.f32 %v769, 0.0
    %v804 = vld [vmem:[#allocation2] sm:$0xff]
    %v805 = vld [vmem:[#allocation2 + $0x8] sm:$0xff]
    %v806 = vld [vmem:[#allocation2 + $0x10] sm:$0xff]
    %v807 = vld [vmem:[#allocation2 + $0x18] sm:$0xff]
    %v808 = vld [vmem:[#allocation2 + $0x20] sm:$0xff]
    %v809 = vld [vmem:[#allocation2 + $0x28] sm:$0xff]
    %v810 = vld [vmem:[#allocation2 + $0x30] sm:$0xff]
    %v811 = vld [vmem:[#allocation2 + $0x38] sm:$0xff]
    %v812 = vld [vmem:[#allocation2 + $0x40] sm:$0xff]
    %v813 = vld [vmem:[#allocation2 + $0x48] sm:$0xff]
    %v814 = vld [vmem:[#allocation2 + $0x50] sm:$0xff]
    %v815 = vld [vmem:[#allocation2 + $0x58] sm:$0xff]
    %v816 = vld [vmem:[#allocation2 + $0x60] sm:$0xff]
    %v817 = vld [vmem:[#allocation2 + $0x68] sm:$0xff]
    %v818 = vld [vmem:[#allocation2 + $0x70] sm:$0xff]
    %v819 = vld [vmem:[#allocation2 + $0x78] sm:$0xff]
    %v820 = vld [vmem:[#allocation2 + $0x80] sm:$0xff]
    %v821 = vld [vmem:[#allocation2 + $0x88] sm:$0xff]
    %v822 = vld [vmem:[#allocation2 + $0x90] sm:$0xff]
    %v823 = vld [vmem:[#allocation2 + $0x98] sm:$0xff]
    %v824 = vld [vmem:[#allocation2 + $0xa0] sm:$0xff]
    %v825 = vld [vmem:[#allocation2 + $0xa8] sm:$0xff]
    %v826 = vld [vmem:[#allocation2 + $0xb0] sm:$0xff]
    %v827 = vld [vmem:[#allocation2 + $0xb8] sm:$0xff]
    %v828 = vld [vmem:[#allocation2 + $0xc0] sm:$0xff]
    %v829 = vld [vmem:[#allocation2 + $0xc8] sm:$0xff]
    %v830 = vld [vmem:[#allocation2 + $0xd0] sm:$0xff]
    %v831 = vld [vmem:[#allocation2 + $0xd8] sm:$0xff]
    %v832 = vld [vmem:[#allocation2 + $0xe0] sm:$0xff]
    %v833 = vld [vmem:[#allocation2 + $0xe8] sm:$0xff]
    %v834 = vld [vmem:[#allocation2 + $0xf0] sm:$0xff]
    %v835 = vld [vmem:[#allocation2 + $0xf8] sm:$0xff]
    %v836 = vld [vmem:[#allocation2 + $0x100] sm:$0xff]
    %v837 = vld [vmem:[#allocation2 + $0x108] sm:$0xff]
    %v838 = vld [vmem:[#allocation2 + $0x110] sm:$0xff]
    %v839 = vld [vmem:[#allocation2 + $0x118] sm:$0xff]
    %v840 = vld [vmem:[#allocation2 + $0x120] sm:$0xff]
    %v841 = vld [vmem:[#allocation2 + $0x128] sm:$0xff]
    %v842 = vld [vmem:[#allocation2 + $0x130] sm:$0xff]
    %v843 = vld [vmem:[#allocation2 + $0x138] sm:$0xff]
    %v844 = vld [vmem:[#allocation2 + $0x140] sm:$0xff]
    %v845 = vld [vmem:[#allocation2 + $0x148] sm:$0xff]
    %v846 = vld [vmem:[#allocation2 + $0x150] sm:$0xff]
    %v847 = vld [vmem:[#allocation2 + $0x158] sm:$0xff]
    %v848 = vld [vmem:[#allocation2 + $0x160] sm:$0xff]
    %v849 = vld [vmem:[#allocation2 + $0x168] sm:$0xff]
    %v850 = vld [vmem:[#allocation2 + $0x170] sm:$0xff]
    %v851 = vld [vmem:[#allocation2 + $0x178] sm:$0xff]
    %v852 = vld [vmem:[#allocation2 + $0x180] sm:$0xff]
    %v853 = vld [vmem:[#allocation2 + $0x188] sm:$0xff]
    %v854 = vld [vmem:[#allocation2 + $0x190] sm:$0xff]
    %v855 = vld [vmem:[#allocation2 + $0x198] sm:$0xff]
    %v856 = vld [vmem:[#allocation2 + $0x1a0] sm:$0xff]
    %v857 = vld [vmem:[#allocation2 + $0x1a8] sm:$0xff]
    %v858 = vld [vmem:[#allocation2 + $0x1b0] sm:$0xff]
    %v859 = vld [vmem:[#allocation2 + $0x1b8] sm:$0xff]
    %v860 = vld [vmem:[#allocation2 + $0x1c0] sm:$0xff]
    %v861 = vld [vmem:[#allocation2 + $0x1c8] sm:$0xff]
    %v862 = vld [vmem:[#allocation2 + $0x1d0] sm:$0xff]
    %v863 = vld [vmem:[#allocation2 + $0x1d8] sm:$0xff]
    %v864 = vld [vmem:[#allocation2 + $0x1e0] sm:$0xff]
    %v865 = vld [vmem:[#allocation2 + $0x1e8] sm:$0xff]
    %v866 = vld [vmem:[#allocation2 + $0x1f0] sm:$0xff]
    %v867 = vld [vmem:[#allocation2 + $0x1f8] sm:$0xff]
    %v868 = vld [vmem:[#allocation2 + $0x200] sm:$0xff]
    %v869 = vld [vmem:[#allocation2 + $0x208] sm:$0xff]
    %v870 = vld [vmem:[#allocation2 + $0x210] sm:$0xff]
    %v871 = vld [vmem:[#allocation2 + $0x218] sm:$0xff]
    %v872 = vld [vmem:[#allocation2 + $0x220] sm:$0xff]
    %v873 = vld [vmem:[#allocation2 + $0x228] sm:$0xff]
    %v874 = vld [vmem:[#allocation2 + $0x230] sm:$0xff]
    %v875 = vld [vmem:[#allocation2 + $0x238] sm:$0xff]
    %v876 = vld [vmem:[#allocation2 + $0x240] sm:$0xff]
    %v877 = vld [vmem:[#allocation2 + $0x248] sm:$0xff]
    %v878 = vld [vmem:[#allocation2 + $0x250] sm:$0xff]
    %v879 = vld [vmem:[#allocation2 + $0x258] sm:$0xff]
    %v880 = vld [vmem:[#allocation2 + $0x260] sm:$0xff]
    %v881 = vld [vmem:[#allocation2 + $0x268] sm:$0xff]
    %v882 = vld [vmem:[#allocation2 + $0x270] sm:$0xff]
    %v883 = vld [vmem:[#allocation2 + $0x278] sm:$0xff]
    %v884 = vld [vmem:[#allocation2 + $0x280] sm:$0xff]
    %v885 = vld [vmem:[#allocation2 + $0x288] sm:$0xff]
    %v886 = vld [vmem:[#allocation2 + $0x290] sm:$0xff]
    %v887 = vld [vmem:[#allocation2 + $0x298] sm:$0xff]
    %v888 = vld [vmem:[#allocation2 + $0x2a0] sm:$0xff]
    %v889 = vld [vmem:[#allocation2 + $0x2a8] sm:$0xff]
    %v890 = vld [vmem:[#allocation2 + $0x2b0] sm:$0xff]
    %v891 = vld [vmem:[#allocation2 + $0x2b8] sm:$0xff]
    %v892 = vld [vmem:[#allocation2 + $0x2c0] sm:$0xff]
    %v893 = vld [vmem:[#allocation2 + $0x2c8] sm:$0xff]
    %v894 = vld [vmem:[#allocation2 + $0x2d0] sm:$0xff]
    %v895 = vld [vmem:[#allocation2 + $0x2d8] sm:$0xff]
    %v896 = vld [vmem:[#allocation2 + $0x2e0] sm:$0xff]
    %v897 = vld [vmem:[#allocation2 + $0x2e8] sm:$0xff]
    %v898 = vld [vmem:[#allocation2 + $0x2f0] sm:$0xff]
    %v899 = vld [vmem:[#allocation2 + $0x2f8] sm:$0xff]
    %v900 = vld [vmem:[#allocation2 + $0x300] sm:$0xff]
    %v901 = vld [vmem:[#allocation2 + $0x308] sm:$0xff]
    %v902 = vld [vmem:[#allocation2 + $0x310] sm:$0xff]
    %v903 = vld [vmem:[#allocation2 + $0x318] sm:$0xff]
    %v904 = vld [vmem:[#allocation2 + $0x320] sm:$0xff]
    %v905 = vld [vmem:[#allocation2 + $0x328] sm:$0xff]
    %v906 = vld [vmem:[#allocation2 + $0x330] sm:$0xff]
    %v907 = vld [vmem:[#allocation2 + $0x338] sm:$0xff]
    %v908 = vld [vmem:[#allocation2 + $0x340] sm:$0xff]
    %v909 = vld [vmem:[#allocation2 + $0x348] sm:$0xff]
    %v910 = vld [vmem:[#allocation2 + $0x350] sm:$0xff]
    %v911 = vld [vmem:[#allocation2 + $0x358] sm:$0xff]
    %v912 = vld [vmem:[#allocation2 + $0x360] sm:$0xff]
    %v913 = vld [vmem:[#allocation2 + $0x368] sm:$0xff]
    %v914 = vld [vmem:[#allocation2 + $0x370] sm:$0xff]
    %v915 = vld [vmem:[#allocation2 + $0x378] sm:$0xff]
    %v916 = vld [vmem:[#allocation2 + $0x380] sm:$0xff]
    %v917 = vld [vmem:[#allocation2 + $0x388] sm:$0xff]
    %v918 = vld [vmem:[#allocation2 + $0x390] sm:$0xff]
    %v919 = vld [vmem:[#allocation2 + $0x398] sm:$0xff]
    %v920 = vld [vmem:[#allocation2 + $0x3a0] sm:$0xff]
    %v921 = vld [vmem:[#allocation2 + $0x3a8] sm:$0xff]
    %v922 = vld [vmem:[#allocation2 + $0x3b0] sm:$0xff]
    %v923 = vld [vmem:[#allocation2 + $0x3b8] sm:$0xff]
    %v924 = vld [vmem:[#allocation2 + $0x3c0] sm:$0xff]
    %v925 = vld [vmem:[#allocation2 + $0x3c8] sm:$0xff]
    %v926 = vld [vmem:[#allocation2 + $0x3d0] sm:$0xff]
    %v927 = vld [vmem:[#allocation2 + $0x3d8] sm:$0xff]
    %v928 = vld [vmem:[#allocation2 + $0x3e0] sm:$0xff]
    %v929 = vld [vmem:[#allocation2 + $0x3e8] sm:$0xff]
    %v930 = vld [vmem:[#allocation2 + $0x3f0] sm:$0xff]
    %v931 = vld [vmem:[#allocation2 + $0x3f8] sm:$0xff]
    %v932 = vld [vmem:[%s6] sm:$0xff]
    %v934 = vlaneseq
    %v935 = vshrl.u32 %v934, 7
    %v936 = vsub.s32 0, %v935
    %v937 = vrot.slane %v932, %v936
    %v938 = vlaneseq
    %v939 = vshrl.u32 %v938, 7
    %v940 = vsub.s32 1, %v939
    %v941 = vrot.slane %v932, %v940
    %v942 = vlaneseq
    %v943 = vshrl.u32 %v942, 7
    %v944 = vsub.s32 2, %v943
    %v945 = vrot.slane %v932, %v944
    %v946 = vlaneseq
    %v947 = vshrl.u32 %v946, 7
    %v948 = vsub.s32 3, %v947
    %v949 = vrot.slane %v932, %v948
    %v950 = vlaneseq
    %v951 = vshrl.u32 %v950, 7
    %v952 = vsub.s32 4, %v951
    %v953 = vrot.slane %v932, %v952
    %v954 = vlaneseq
    %v955 = vshrl.u32 %v954, 7
    %v956 = vsub.s32 5, %v955
    %v957 = vrot.slane %v932, %v956
    %v958 = vlaneseq
    %v959 = vshrl.u32 %v958, 7
    %v960 = vsub.s32 6, %v959
    %v961 = vrot.slane %v932, %v960
    %v962 = vlaneseq
    %v963 = vshrl.u32 %v962, 7
    %v964 = vsub.s32 7, %v963
    %v965 = vrot.slane %v932, %v964
    %974 = vmatprep.subr.mxu0 %v805
    %975 = vmatpush1.msra.mxu0 %v804
    %976 = vmatprep.subr.mxu0 %v813
    %977 = vmatpush1.msra.mxu0 %v812
    %978 = vmatprep.subr.mxu0 %v821
    %979 = vmatpush1.msra.mxu0 %v820
    %980 = vmatprep.subr.mxu0 %v829
    %981 = vmatpush1.msra.mxu0 %v828
    %982 = vmatprep.subr.mxu0 %v837
    %983 = vmatpush1.msra.mxu0 %v836
    %984 = vmatprep.subr.mxu0 %v845
    %985 = vmatpush1.msra.mxu0 %v844
    %986 = vmatprep.subr.mxu0 %v853
    %987 = vmatpush1.msra.mxu0 %v852
    %988 = vmatprep.subr.mxu0 %v861
    %989 = vmatpush1.msra.mxu0 %v860
    %990 = vmatprep.subr.mxu0 %v869
    %991 = vmatpush1.msra.mxu0 %v868
    %992 = vmatprep.subr.mxu0 %v877
    %993 = vmatpush1.msra.mxu0 %v876
    %994 = vmatprep.subr.mxu0 %v885
    %995 = vmatpush1.msra.mxu0 %v884
    %996 = vmatprep.subr.mxu0 %v893
    %997 = vmatpush1.msra.mxu0 %v892
    %998 = vmatprep.subr.mxu0 %v901
    %999 = vmatpush1.msra.mxu0 %v900
    %1000 = vmatprep.subr.mxu0 %v909
    %1001 = vmatpush1.msra.mxu0 %v908
    %1002 = vmatprep.subr.mxu0 %v917
    %1003 = vmatpush1.msra.mxu0 %v916
    %1004 = vmatprep.subr.mxu0 %v925
    %1005 = vmatpush1.msra.mxu0 %v924
    %1006 = vmatprep.subr.mxu0 0.0
    %1007 = vmatpush1.msra.mxu0 0.0
    %1008 = vmatprep.subr.mxu0 0.0
    %1009 = vmatpush1.msra.mxu0 0.0
    %1010 = vmatprep.subr.mxu0 0.0
    %1011 = vmatpush1.msra.mxu0 0.0
    %1012 = vmatprep.subr.mxu0 0.0
    %1013 = vmatpush1.msra.mxu0 0.0
    %1014 = vmatprep.subr.mxu0 0.0
    %1015 = vmatpush1.msra.mxu0 0.0
    %1016 = vmatprep.subr.mxu0 0.0
    %1017 = vmatpush1.msra.mxu0 0.0
    %1018 = vmatprep.subr.mxu0 0.0
    %1019 = vmatpush1.msra.mxu0 0.0
    %1020 = vmatprep.subr.mxu0 0.0
    %1021 = vmatpush1.msra.mxu0 0.0
    %1022 = vmatprep.subr.mxu0 0.0
    %1023 = vmatpush1.msra.mxu0 0.0
    %1024 = vmatprep.subr.mxu0 0.0
    %1025 = vmatpush1.msra.mxu0 0.0
    %1026 = vmatprep.subr.mxu0 0.0
    %1027 = vmatpush1.msra.mxu0 0.0
    %1028 = vmatprep.subr.mxu0 0.0
    %1029 = vmatpush1.msra.mxu0 0.0
    %1030 = vmatprep.subr.mxu0 0.0
    %1031 = vmatpush1.msra.mxu0 0.0
    %1032 = vmatprep.subr.mxu0 0.0
    %1033 = vmatpush1.msra.mxu0 0.0
    %1034 = vmatprep.subr.mxu0 0.0
    %1035 = vmatpush1.msra.mxu0 0.0
    %1036 = vmatprep.subr.mxu0 0.0
    %1037 = vmatpush1.msra.mxu0 0.0
    %1038 = vmatprep.mubr.f32.mxu0 0.0
    %1039 = vmatmul.mubr.f32.gmra.mrb[0].mxu0 %v772
    %v1040 = vpop.f32.mrb[0].mxu0
    %v1041 = vadd.f32 %v937, %v1040
    %v1042 = vpop.f32.mrb[0].mxu0
    %v1043 = vadd.f32 %v941, %v1042
    %1044 = vmatprep.mubr.f32.mxu0 0.0
    %1045 = vmatmul.mubr.f32.gmra.mrb[0].mxu0 %v773
    %v1046 = vpop.f32.mrb[0].mxu0
    %v1047 = vadd.f32 %v937, %v1046
    %v1048 = vpop.f32.mrb[0].mxu0
    %v1049 = vadd.f32 %v941, %v1048
    %1050 = vmatprep.mubr.f32.mxu0 0.0
    %1051 = vmatmul.mubr.f32.gmra.mrb[0].mxu0 %v774
    %v1052 = vpop.f32.mrb[0].mxu0
    %v1053 = vadd.f32 %v937, %v1052
    %v1054 = vpop.f32.mrb[0].mxu0
    %v1055 = vadd.f32 %v941, %v1054
    %1056 = vmatprep.mubr.f32.mxu0 0.0
    %1057 = vmatmul.mubr.f32.gmra.mrb[0].mxu0 %v775
    %v1058 = vpop.f32.mrb[0].mxu0
    %v1059 = vadd.f32 %v937, %v1058
    %v1060 = vpop.f32.mrb[0].mxu0
    %v1061 = vadd.f32 %v941, %v1060
    %1062 = vmatprep.mubr.f32.mxu0 0.0
    %1063 = vmatmul.mubr.f32.gmra.mrb[0].mxu0 %v776
    %v1064 = vpop.f32.mrb[0].mxu0
    %v1065 = vadd.f32 %v937, %v1064
    %v1066 = vpop.f32.mrb[0].mxu0
    %v1067 = vadd.f32 %v941, %v1066
    %1068 = vmatprep.mubr.f32.mxu0 0.0
    %1069 = vmatmul.mubr.f32.gmra.mrb[0].mxu0 %v777
    %v1070 = vpop.f32.mrb[0].mxu0
    %v1071 = vadd.f32 %v937, %v1070
    %v1072 = vpop.f32.mrb[0].mxu0
    %v1073 = vadd.f32 %v941, %v1072
    %1074 = vmatprep.mubr.f32.mxu0 0.0
    %1075 = vmatmul.mubr.f32.gmra.mrb[0].mxu0 %v778
    %v1076 = vpop.f32.mrb[0].mxu0
    %v1077 = vadd.f32 %v937, %v1076
    %v1078 = vpop.f32.mrb[0].mxu0
    %v1079 = vadd.f32 %v941, %v1078
    %1080 = vmatprep.mubr.f32.mxu0 0.0
    %1081 = vmatmul.mubr.f32.gmra.mrb[0].mxu0 %v779
    %v1082 = vpop.f32.mrb[0].mxu0
    %v1083 = vadd.f32 %v937, %v1082
    %v1084 = vpop.f32.mrb[0].mxu0
    %v1085 = vadd.f32 %v941, %v1084
    %1086 = vmatprep.mubr.f32.mxu0 0.0
    %1087 = vmatmul.mubr.f32.gmra.mrb[0].mxu0 %v780
    %v1088 = vpop.f32.mrb[0].mxu0
    %v1089 = vadd.f32 %v937, %v1088
    %v1090 = vpop.f32.mrb[0].mxu0
    %v1091 = vadd.f32 %v941, %v1090
    %1092 = vmatprep.mubr.f32.mxu0 0.0
    %1093 = vmatmul.mubr.f32.gmra.mrb[0].mxu0 %v781
    %v1094 = vpop.f32.mrb[0].mxu0
    %v1095 = vadd.f32 %v937, %v1094
    %v1096 = vpop.f32.mrb[0].mxu0
    %v1097 = vadd.f32 %v941, %v1096
    %1098 = vmatprep.mubr.f32.mxu0 0.0
    %1099 = vmatmul.mubr.f32.gmra.mrb[0].mxu0 %v782
    %v1100 = vpop.f32.mrb[0].mxu0
    %v1101 = vadd.f32 %v937, %v1100
    %v1102 = vpop.f32.mrb[0].mxu0
    %v1103 = vadd.f32 %v941, %v1102
    %1104 = vmatprep.mubr.f32.mxu0 0.0
    %1105 = vmatmul.mubr.f32.gmra.mrb[0].mxu0 %v783
    %v1106 = vpop.f32.mrb[0].mxu0
    %v1107 = vadd.f32 %v937, %v1106
    %v1108 = vpop.f32.mrb[0].mxu0
    %v1109 = vadd.f32 %v941, %v1108
    %1110 = vmatprep.mubr.f32.mxu0 0.0
    %1111 = vmatmul.mubr.f32.gmra.mrb[0].mxu0 %v784
    %v1112 = vpop.f32.mrb[0].mxu0
    %v1113 = vadd.f32 %v937, %v1112
    %v1114 = vpop.f32.mrb[0].mxu0
    %v1115 = vadd.f32 %v941, %v1114
    %1116 = vmatprep.mubr.f32.mxu0 0.0
    %1117 = vmatmul.mubr.f32.gmra.mrb[0].mxu0 %v785
    %v1118 = vpop.f32.mrb[0].mxu0
    %v1119 = vadd.f32 %v937, %v1118
    %v1120 = vpop.f32.mrb[0].mxu0
    %v1121 = vadd.f32 %v941, %v1120
    %1122 = vmatprep.mubr.f32.mxu0 0.0
    %1123 = vmatmul.mubr.f32.gmra.mrb[0].mxu0 %v786
    %v1124 = vpop.f32.mrb[0].mxu0
    %v1125 = vadd.f32 %v937, %v1124
    %v1126 = vpop.f32.mrb[0].mxu0
    %v1127 = vadd.f32 %v941, %v1126
    %1128 = vmatprep.mubr.f32.mxu0 0.0
    %1129 = vmatmul.mubr.f32.gmra.mrb[0].mxu0 %v787
    %v1130 = vpop.f32.mrb[0].mxu0
    %v1131 = vadd.f32 %v937, %v1130
    %v1132 = vpop.f32.mrb[0].mxu0
    %v1133 = vadd.f32 %v941, %v1132
    %1134 = vmatprep.mubr.f32.mxu0 0.0
    %1135 = vmatmul.mubr.f32.gmra.mrb[0].mxu0 %v788
    %v1136 = vpop.f32.mrb[0].mxu0
    %v1137 = vadd.f32 %v937, %v1136
    %v1138 = vpop.f32.mrb[0].mxu0
    %v1139 = vadd.f32 %v941, %v1138
    %1140 = vmatprep.mubr.f32.mxu0 0.0
    %1141 = vmatmul.mubr.f32.gmra.mrb[0].mxu0 %v789
    %v1142 = vpop.f32.mrb[0].mxu0
    %v1143 = vadd.f32 %v937, %v1142
    %v1144 = vpop.f32.mrb[0].mxu0
    %v1145 = vadd.f32 %v941, %v1144
    %1146 = vmatprep.mubr.f32.mxu0 0.0
    %1147 = vmatmul.mubr.f32.gmra.mrb[0].mxu0 %v790
    %v1148 = vpop.f32.mrb[0].mxu0
    %v1149 = vadd.f32 %v937, %v1148
    %v1150 = vpop.f32.mrb[0].mxu0
    %v1151 = vadd.f32 %v941, %v1150
    %1152 = vmatprep.mubr.f32.mxu0 0.0
    %1153 = vmatmul.mubr.f32.gmra.mrb[0].mxu0 %v791
    %v1154 = vpop.f32.mrb[0].mxu0
    %v1155 = vadd.f32 %v937, %v1154
    %v1156 = vpop.f32.mrb[0].mxu0
    %v1157 = vadd.f32 %v941, %v1156
    %1158 = vmatprep.mubr.f32.mxu0 0.0
    %1159 = vmatmul.mubr.f32.gmra.mrb[0].mxu0 %v792
    %v1160 = vpop.f32.mrb[0].mxu0
    %v1161 = vadd.f32 %v937, %v1160
    %v1162 = vpop.f32.mrb[0].mxu0
    %v1163 = vadd.f32 %v941, %v1162
    %1164 = vmatprep.mubr.f32.mxu0 0.0
    %1165 = vmatmul.mubr.f32.gmra.mrb[0].mxu0 %v793
    %v1166 = vpop.f32.mrb[0].mxu0
    %v1167 = vadd.f32 %v937, %v1166
    %v1168 = vpop.f32.mrb[0].mxu0
    %v1169 = vadd.f32 %v941, %v1168
    %1170 = vmatprep.mubr.f32.mxu0 0.0
    %1171 = vmatmul.mubr.f32.gmra.mrb[0].mxu0 %v794
    %v1172 = vpop.f32.mrb[0].mxu0
    %v1173 = vadd.f32 %v937, %v1172
    %v1174 = vpop.f32.mrb[0].mxu0
    %v1175 = vadd.f32 %v941, %v1174
    %1176 = vmatprep.mubr.f32.mxu0 0.0
    %1177 = vmatmul.mubr.f32.gmra.mrb[0].mxu0 %v795
    %v1178 = vpop.f32.mrb[0].mxu0
    %v1179 = vadd.f32 %v937, %v1178
    %v1180 = vpop.f32.mrb[0].mxu0
    %v1181 = vadd.f32 %v941, %v1180
    %1182 = vmatprep.mubr.f32.mxu0 0.0
    %1183 = vmatmul.mubr.f32.gmra.mrb[0].mxu0 %v796
    %v1184 = vpop.f32.mrb[0].mxu0
    %v1185 = vadd.f32 %v937, %v1184
    %v1186 = vpop.f32.mrb[0].mxu0
    %v1187 = vadd.f32 %v941, %v1186
    %1188 = vmatprep.mubr.f32.mxu0 0.0
    %1189 = vmatmul.mubr.f32.gmra.mrb[0].mxu0 %v797
    %v1190 = vpop.f32.mrb[0].mxu0
    %v1191 = vadd.f32 %v937, %v1190
    %v1192 = vpop.f32.mrb[0].mxu0
    %v1193 = vadd.f32 %v941, %v1192
    %1194 = vmatprep.mubr.f32.mxu0 0.0
    %1195 = vmatmul.mubr.f32.gmra.mrb[0].mxu0 %v798
    %v1196 = vpop.f32.mrb[0].mxu0
    %v1197 = vadd.f32 %v937, %v1196
    %v1198 = vpop.f32.mrb[0].mxu0
    %v1199 = vadd.f32 %v941, %v1198
    %1200 = vmatprep.mubr.f32.mxu0 0.0
    %1201 = vmatmul.mubr.f32.gmra.mrb[0].mxu0 %v799
    %v1202 = vpop.f32.mrb[0].mxu0
    %v1203 = vadd.f32 %v937, %v1202
    %v1204 = vpop.f32.mrb[0].mxu0
    %v1205 = vadd.f32 %v941, %v1204
    %1206 = vmatprep.mubr.f32.mxu0 0.0
    %1207 = vmatmul.mubr.f32.gmra.mrb[0].mxu0 %v800
    %v1208 = vpop.f32.mrb[0].mxu0
    %v1209 = vadd.f32 %v937, %v1208
    %v1210 = vpop.f32.mrb[0].mxu0
    %v1211 = vadd.f32 %v941, %v1210
    %1212 = vmatprep.mubr.f32.mxu0 0.0
    %1213 = vmatmul.mubr.f32.gmra.mrb[0].mxu0 %v801
    %v1214 = vpop.f32.mrb[0].mxu0
    %v1215 = vadd.f32 %v937, %v1214
    %v1216 = vpop.f32.mrb[0].mxu0
    %v1217 = vadd.f32 %v941, %v1216
    %1218 = vmatprep.mubr.f32.mxu0 0.0
    %1219 = vmatmul.mubr.f32.gmra.mrb[0].mxu0 %v802
    %v1220 = vpop.f32.mrb[0].mxu0
    %v1221 = vadd.f32 %v937, %v1220
    %v1222 = vpop.f32.mrb[0].mxu0
    %v1223 = vadd.f32 %v941, %v1222
    %1224 = vmatprep.mubr.f32.mxu0 0.0
    %1225 = vmatmul.mubr.f32.gmra.mrb[0].mxu0 %v803
    %v1226 = vpop.f32.mrb[0].mxu0
    %v1227 = vadd.f32 %v937, %v1226
    %v1228 = vpop.f32.mrb[0].mxu0
    %v1229 = vadd.f32 %v941, %v1228
    %1230 = vdwg.mxu0
    %1231 = vmatprep.subr.mxu0 %v807
    %1232 = vmatpush1.msra.mxu0 %v806
    %1233 = vmatprep.subr.mxu0 %v815
    %1234 = vmatpush1.msra.mxu0 %v814
    %1235 = vmatprep.subr.mxu0 %v823
    %1236 = vmatpush1.msra.mxu0 %v822
    %1237 = vmatprep.subr.mxu0 %v831
    %1238 = vmatpush1.msra.mxu0 %v830
    %1239 = vmatprep.subr.mxu0 %v839
    %1240 = vmatpush1.msra.mxu0 %v838
    %1241 = vmatprep.subr.mxu0 %v847
    %1242 = vmatpush1.msra.mxu0 %v846
    %1243 = vmatprep.subr.mxu0 %v855
    %1244 = vmatpush1.msra.mxu0 %v854
    %1245 = vmatprep.subr.mxu0 %v863
    %1246 = vmatpush1.msra.mxu0 %v862
    %1247 = vmatprep.subr.mxu0 %v871
    %1248 = vmatpush1.msra.mxu0 %v870
    %1249 = vmatprep.subr.mxu0 %v879
    %1250 = vmatpush1.msra.mxu0 %v878
    %1251 = vmatprep.subr.mxu0 %v887
    %1252 = vmatpush1.msra.mxu0 %v886
    %1253 = vmatprep.subr.mxu0 %v895
    %1254 = vmatpush1.msra.mxu0 %v894
    %1255 = vmatprep.subr.mxu0 %v903
    %1256 = vmatpush1.msra.mxu0 %v902
    %1257 = vmatprep.subr.mxu0 %v911
    %1258 = vmatpush1.msra.mxu0 %v910
    %1259 = vmatprep.subr.mxu0 %v919
    %1260 = vmatpush1.msra.mxu0 %v918
    %1261 = vmatprep.subr.mxu0 %v927
    %1262 = vmatpush1.msra.mxu0 %v926
    %1263 = vmatprep.subr.mxu0 0.0
    %1264 = vmatpush1.msra.mxu0 0.0
    %1265 = vmatprep.subr.mxu0 0.0
    %1266 = vmatpush1.msra.mxu0 0.0
    %1267 = vmatprep.subr.mxu0 0.0
    %1268 = vmatpush1.msra.mxu0 0.0
    %1269 = vmatprep.subr.mxu0 0.0
    %1270 = vmatpush1.msra.mxu0 0.0
    %1271 = vmatprep.subr.mxu0 0.0
    %1272 = vmatpush1.msra.mxu0 0.0
    %1273 = vmatprep.subr.mxu0 0.0
    %1274 = vmatpush1.msra.mxu0 0.0
    %1275 = vmatprep.subr.mxu0 0.0
    %1276 = vmatpush1.msra.mxu0 0.0
    %1277 = vmatprep.subr.mxu0 0.0
    %1278 = vmatpush1.msra.mxu0 0.0
    %1279 = vmatprep.subr.mxu0 0.0
    %1280 = vmatpush1.msra.mxu0 0.0
    %1281 = vmatprep.subr.mxu0 0.0
    %1282 = vmatpush1.msra.mxu0 0.0
    %1283 = vmatprep.subr.mxu0 0.0
    %1284 = vmatpush1.msra.mxu0 0.0
    %1285 = vmatprep.subr.mxu0 0.0
    %1286 = vmatpush1.msra.mxu0 0.0
    %1287 = vmatprep.subr.mxu0 0.0
    %1288 = vmatpush1.msra.mxu0 0.0
    %1289 = vmatprep.subr.mxu0 0.0
    %1290 = vmatpush1.msra.mxu0 0.0
    %1291 = vmatprep.subr.mxu0 0.0
    %1292 = vmatpush1.msra.mxu0 0.0
    %1293 = vmatprep.subr.mxu0 0.0
    %1294 = vmatpush1.msra.mxu0 0.0
    %1295 = vmatprep.mubr.f32.mxu0 0.0
    %1296 = vmatmul.mubr.f32.gmra.mrb[0].mxu0 %v772
    %v1297 = vpop.f32.mrb[0].mxu0
    %v1298 = vadd.f32 %v945, %v1297
    %v1299 = vpop.f32.mrb[0].mxu0
    %v1300 = vadd.f32 %v949, %v1299
    %1301 = vmatprep.mubr.f32.mxu0 0.0
    %1302 = vmatmul.mubr.f32.gmra.mrb[0].mxu0 %v773
    %v1303 = vpop.f32.mrb[0].mxu0
    %v1304 = vadd.f32 %v945, %v1303
    %v1305 = vpop.f32.mrb[0].mxu0
    %v1306 = vadd.f32 %v949, %v1305
    %1307 = vmatprep.mubr.f32.mxu0 0.0
    %1308 = vmatmul.mubr.f32.gmra.mrb[0].mxu0 %v774
    %v1309 = vpop.f32.mrb[0].mxu0
    %v1310 = vadd.f32 %v945, %v1309
    %v1311 = vpop.f32.mrb[0].mxu0
    %v1312 = vadd.f32 %v949, %v1311
    %1313 = vmatprep.mubr.f32.mxu0 0.0
    %1314 = vmatmul.mubr.f32.gmra.mrb[0].mxu0 %v775
    %v1315 = vpop.f32.mrb[0].mxu0
    %v1316 = vadd.f32 %v945, %v1315
    %v1317 = vpop.f32.mrb[0].mxu0
    %v1318 = vadd.f32 %v949, %v1317
    %1319 = vmatprep.mubr.f32.mxu0 0.0
    %1320 = vmatmul.mubr.f32.gmra.mrb[0].mxu0 %v776
    %v1321 = vpop.f32.mrb[0].mxu0
    %v1322 = vadd.f32 %v945, %v1321
    %v1323 = vpop.f32.mrb[0].mxu0
    %v1324 = vadd.f32 %v949, %v1323
    %1325 = vmatprep.mubr.f32.mxu0 0.0
    %1326 = vmatmul.mubr.f32.gmra.mrb[0].mxu0 %v777
    %v1327 = vpop.f32.mrb[0].mxu0
    %v1328 = vadd.f32 %v945, %v1327
    %v1329 = vpop.f32.mrb[0].mxu0
    %v1330 = vadd.f32 %v949, %v1329
    %1331 = vmatprep.mubr.f32.mxu0 0.0
    %1332 = vmatmul.mubr.f32.gmra.mrb[0].mxu0 %v778
    %v1333 = vpop.f32.mrb[0].mxu0
    %v1334 = vadd.f32 %v945, %v1333
    %v1335 = vpop.f32.mrb[0].mxu0
    %v1336 = vadd.f32 %v949, %v1335
    %1337 = vmatprep.mubr.f32.mxu0 0.0
    %1338 = vmatmul.mubr.f32.gmra.mrb[0].mxu0 %v779
    %v1339 = vpop.f32.mrb[0].mxu0
    %v1340 = vadd.f32 %v945, %v1339
    %v1341 = vpop.f32.mrb[0].mxu0
    %v1342 = vadd.f32 %v949, %v1341
    %1343 = vmatprep.mubr.f32.mxu0 0.0
    %1344 = vmatmul.mubr.f32.gmra.mrb[0].mxu0 %v780
    %v1345 = vpop.f32.mrb[0].mxu0
    %v1346 = vadd.f32 %v945, %v1345
    %v1347 = vpop.f32.mrb[0].mxu0
    %v1348 = vadd.f32 %v949, %v1347
    %1349 = vmatprep.mubr.f32.mxu0 0.0
    %1350 = vmatmul.mubr.f32.gmra.mrb[0].mxu0 %v781
    %v1351 = vpop.f32.mrb[0].mxu0
    %v1352 = vadd.f32 %v945, %v1351
    %v1353 = vpop.f32.mrb[0].mxu0
    %v1354 = vadd.f32 %v949, %v1353
    %1355 = vmatprep.mubr.f32.mxu0 0.0
    %1356 = vmatmul.mubr.f32.gmra.mrb[0].mxu0 %v782
    %v1357 = vpop.f32.mrb[0].mxu0
    %v1358 = vadd.f32 %v945, %v1357
    %v1359 = vpop.f32.mrb[0].mxu0
    %v1360 = vadd.f32 %v949, %v1359
    %1361 = vmatprep.mubr.f32.mxu0 0.0
    %1362 = vmatmul.mubr.f32.gmra.mrb[0].mxu0 %v783
    %v1363 = vpop.f32.mrb[0].mxu0
    %v1364 = vadd.f32 %v945, %v1363
    %v1365 = vpop.f32.mrb[0].mxu0
    %v1366 = vadd.f32 %v949, %v1365
    %1367 = vmatprep.mubr.f32.mxu0 0.0
    %1368 = vmatmul.mubr.f32.gmra.mrb[0].mxu0 %v784
    %v1369 = vpop.f32.mrb[0].mxu0
    %v1370 = vadd.f32 %v945, %v1369
    %v1371 = vpop.f32.mrb[0].mxu0
    %v1372 = vadd.f32 %v949, %v1371
    %1373 = vmatprep.mubr.f32.mxu0 0.0
    %1374 = vmatmul.mubr.f32.gmra.mrb[0].mxu0 %v785
    %v1375 = vpop.f32.mrb[0].mxu0
    %v1376 = vadd.f32 %v945, %v1375
    %v1377 = vpop.f32.mrb[0].mxu0
    %v1378 = vadd.f32 %v949, %v1377
    %1379 = vmatprep.mubr.f32.mxu0 0.0
    %1380 = vmatmul.mubr.f32.gmra.mrb[0].mxu0 %v786
    %v1381 = vpop.f32.mrb[0].mxu0
    %v1382 = vadd.f32 %v945, %v1381
    %v1383 = vpop.f32.mrb[0].mxu0
    %v1384 = vadd.f32 %v949, %v1383
    %1385 = vmatprep.mubr.f32.mxu0 0.0
    %1386 = vmatmul.mubr.f32.gmra.mrb[0].mxu0 %v787
    %v1387 = vpop.f32.mrb[0].mxu0
    %v1388 = vadd.f32 %v945, %v1387
    %v1389 = vpop.f32.mrb[0].mxu0
    %v1390 = vadd.f32 %v949, %v1389
    %1391 = vmatprep.mubr.f32.mxu0 0.0
    %1392 = vmatmul.mubr.f32.gmra.mrb[0].mxu0 %v788
    %v1393 = vpop.f32.mrb[0].mxu0
    %v1394 = vadd.f32 %v945, %v1393
    %v1395 = vpop.f32.mrb[0].mxu0
    %v1396 = vadd.f32 %v949, %v1395
    %1397 = vmatprep.mubr.f32.mxu0 0.0
    %1398 = vmatmul.mubr.f32.gmra.mrb[0].mxu0 %v789
    %v1399 = vpop.f32.mrb[0].mxu0
    %v1400 = vadd.f32 %v945, %v1399
    %v1401 = vpop.f32.mrb[0].mxu0
    %v1402 = vadd.f32 %v949, %v1401
    %1403 = vmatprep.mubr.f32.mxu0 0.0
    %1404 = vmatmul.mubr.f32.gmra.mrb[0].mxu0 %v790
    %v1405 = vpop.f32.mrb[0].mxu0
    %v1406 = vadd.f32 %v945, %v1405
    %v1407 = vpop.f32.mrb[0].mxu0
    %v1408 = vadd.f32 %v949, %v1407
    %1409 = vmatprep.mubr.f32.mxu0 0.0
    %1410 = vmatmul.mubr.f32.gmra.mrb[0].mxu0 %v791
    %v1411 = vpop.f32.mrb[0].mxu0
    %v1412 = vadd.f32 %v945, %v1411
    %v1413 = vpop.f32.mrb[0].mxu0
    %v1414 = vadd.f32 %v949, %v1413
    %1415 = vmatprep.mubr.f32.mxu0 0.0
    %1416 = vmatmul.mubr.f32.gmra.mrb[0].mxu0 %v792
    %v1417 = vpop.f32.mrb[0].mxu0
    %v1418 = vadd.f32 %v945, %v1417
    %v1419 = vpop.f32.mrb[0].mxu0
    %v1420 = vadd.f32 %v949, %v1419
    %1421 = vmatprep.mubr.f32.mxu0 0.0
    %1422 = vmatmul.mubr.f32.gmra.mrb[0].mxu0 %v793
    %v1423 = vpop.f32.mrb[0].mxu0
    %v1424 = vadd.f32 %v945, %v1423
    %v1425 = vpop.f32.mrb[0].mxu0
    %v1426 = vadd.f32 %v949, %v1425
    %1427 = vmatprep.mubr.f32.mxu0 0.0
    %1428 = vmatmul.mubr.f32.gmra.mrb[0].mxu0 %v794
    %v1429 = vpop.f32.mrb[0].mxu0
    %v1430 = vadd.f32 %v945, %v1429
    %v1431 = vpop.f32.mrb[0].mxu0
    %v1432 = vadd.f32 %v949, %v1431
    %1433 = vmatprep.mubr.f32.mxu0 0.0
    %1434 = vmatmul.mubr.f32.gmra.mrb[0].mxu0 %v795
    %v1435 = vpop.f32.mrb[0].mxu0
    %v1436 = vadd.f32 %v945, %v1435
    %v1437 = vpop.f32.mrb[0].mxu0
    %v1438 = vadd.f32 %v949, %v1437
    %1439 = vmatprep.mubr.f32.mxu0 0.0
    %1440 = vmatmul.mubr.f32.gmra.mrb[0].mxu0 %v796
    %v1441 = vpop.f32.mrb[0].mxu0
    %v1442 = vadd.f32 %v945, %v1441
    %v1443 = vpop.f32.mrb[0].mxu0
    %v1444 = vadd.f32 %v949, %v1443
    %1445 = vmatprep.mubr.f32.mxu0 0.0
    %1446 = vmatmul.mubr.f32.gmra.mrb[0].mxu0 %v797
    %v1447 = vpop.f32.mrb[0].mxu0
    %v1448 = vadd.f32 %v945, %v1447
    %v1449 = vpop.f32.mrb[0].mxu0
    %v1450 = vadd.f32 %v949, %v1449
    %1451 = vmatprep.mubr.f32.mxu0 0.0
    %1452 = vmatmul.mubr.f32.gmra.mrb[0].mxu0 %v798
    %v1453 = vpop.f32.mrb[0].mxu0
    %v1454 = vadd.f32 %v945, %v1453
    %v1455 = vpop.f32.mrb[0].mxu0
    %v1456 = vadd.f32 %v949, %v1455
    %1457 = vmatprep.mubr.f32.mxu0 0.0
    %1458 = vmatmul.mubr.f32.gmra.mrb[0].mxu0 %v799
    %v1459 = vpop.f32.mrb[0].mxu0
    %v1460 = vadd.f32 %v945, %v1459
    %v1461 = vpop.f32.mrb[0].mxu0
    %v1462 = vadd.f32 %v949, %v1461
    %1463 = vmatprep.mubr.f32.mxu0 0.0
    %1464 = vmatmul.mubr.f32.gmra.mrb[0].mxu0 %v800
    %v1465 = vpop.f32.mrb[0].mxu0
    %v1466 = vadd.f32 %v945, %v1465
    %v1467 = vpop.f32.mrb[0].mxu0
    %v1468 = vadd.f32 %v949, %v1467
    %1469 = vmatprep.mubr.f32.mxu0 0.0
    %1470 = vmatmul.mubr.f32.gmra.mrb[0].mxu0 %v801
    %v1471 = vpop.f32.mrb[0].mxu0
    %v1472 = vadd.f32 %v945, %v1471
    %v1473 = vpop.f32.mrb[0].mxu0
    %v1474 = vadd.f32 %v949, %v1473
    %1475 = vmatprep.mubr.f32.mxu0 0.0
    %1476 = vmatmul.mubr.f32.gmra.mrb[0].mxu0 %v802
    %v1477 = vpop.f32.mrb[0].mxu0
    %v1478 = vadd.f32 %v945, %v1477
    %v1479 = vpop.f32.mrb[0].mxu0
    %v1480 = vadd.f32 %v949, %v1479
    %1481 = vmatprep.mubr.f32.mxu0 0.0
    %1482 = vmatmul.mubr.f32.gmra.mrb[0].mxu0 %v803
    %v1483 = vpop.f32.mrb[0].mxu0
    %v1484 = vadd.f32 %v945, %v1483
    %v1485 = vpop.f32.mrb[0].mxu0
    %v1486 = vadd.f32 %v949, %v1485
    %1487 = vdwg.mxu0
    %1488 = vmatprep.subr.mxu0 %v809
    %1489 = vmatpush1.msra.mxu0 %v808
    %1490 = vmatprep.subr.mxu0 %v817
    %1491 = vmatpush1.msra.mxu0 %v816
    %1492 = vmatprep.subr.mxu0 %v825
    %1493 = vmatpush1.msra.mxu0 %v824
    %1494 = vmatprep.subr.mxu0 %v833
    %1495 = vmatpush1.msra.mxu0 %v832
    %1496 = vmatprep.subr.mxu0 %v841
    %1497 = vmatpush1.msra.mxu0 %v840
    %1498 = vmatprep.subr.mxu0 %v849
    %1499 = vmatpush1.msra.mxu0 %v848
    %1500 = vmatprep.subr.mxu0 %v857
    %1501 = vmatpush1.msra.mxu0 %v856
    %1502 = vmatprep.subr.mxu0 %v865
    %1503 = vmatpush1.msra.mxu0 %v864
    %1504 = vmatprep.subr.mxu0 %v873
    %1505 = vmatpush1.msra.mxu0 %v872
    %1506 = vmatprep.subr.mxu0 %v881
    %1507 = vmatpush1.msra.mxu0 %v880
    %1508 = vmatprep.subr.mxu0 %v889
    %1509 = vmatpush1.msra.mxu0 %v888
    %1510 = vmatprep.subr.mxu0 %v897
    %1511 = vmatpush1.msra.mxu0 %v896
    %1512 = vmatprep.subr.mxu0 %v905
    %1513 = vmatpush1.msra.mxu0 %v904
    %1514 = vmatprep.subr.mxu0 %v913
    %1515 = vmatpush1.msra.mxu0 %v912
    %1516 = vmatprep.subr.mxu0 %v921
    %1517 = vmatpush1.msra.mxu0 %v920
    %1518 = vmatprep.subr.mxu0 %v929
    %1519 = vmatpush1.msra.mxu0 %v928
    %1520 = vmatprep.subr.mxu0 0.0
    %1521 = vmatpush1.msra.mxu0 0.0
    %1522 = vmatprep.subr.mxu0 0.0
    %1523 = vmatpush1.msra.mxu0 0.0
    %1524 = vmatprep.subr.mxu0 0.0
    %1525 = vmatpush1.msra.mxu0 0.0
    %1526 = vmatprep.subr.mxu0 0.0
    %1527 = vmatpush1.msra.mxu0 0.0
    %1528 = vmatprep.subr.mxu0 0.0
    %1529 = vmatpush1.msra.mxu0 0.0
    %1530 = vmatprep.subr.mxu0 0.0
    %1531 = vmatpush1.msra.mxu0 0.0
    %1532 = vmatprep.subr.mxu0 0.0
    %1533 = vmatpush1.msra.mxu0 0.0
    %1534 = vmatprep.subr.mxu0 0.0
    %1535 = vmatpush1.msra.mxu0 0.0
    %1536 = vmatprep.subr.mxu0 0.0
    %1537 = vmatpush1.msra.mxu0 0.0
    %1538 = vmatprep.subr.mxu0 0.0
    %1539 = vmatpush1.msra.mxu0 0.0
    %1540 = vmatprep.subr.mxu0 0.0
    %1541 = vmatpush1.msra.mxu0 0.0
    %1542 = vmatprep.subr.mxu0 0.0
    %1543 = vmatpush1.msra.mxu0 0.0
    %1544 = vmatprep.subr.mxu0 0.0
    %1545 = vmatpush1.msra.mxu0 0.0
    %1546 = vmatprep.subr.mxu0 0.0
    %1547 = vmatpush1.msra.mxu0 0.0
    %1548 = vmatprep.subr.mxu0 0.0
    %1549 = vmatpush1.msra.mxu0 0.0
    %1550 = vmatprep.subr.mxu0 0.0
    %1551 = vmatpush1.msra.mxu0 0.0
    %1552 = vmatprep.mubr.f32.mxu0 0.0
    %1553 = vmatmul.mubr.f32.gmra.mrb[0].mxu0 %v772
    %v1554 = vpop.f32.mrb[0].mxu0
    %v1555 = vadd.f32 %v953, %v1554
    %v1556 = vpop.f32.mrb[0].mxu0
    %v1557 = vadd.f32 %v957, %v1556
    %1558 = vmatprep.mubr.f32.mxu0 0.0
    %1559 = vmatmul.mubr.f32.gmra.mrb[0].mxu0 %v773
    %v1560 = vpop.f32.mrb[0].mxu0
    %v1561 = vadd.f32 %v953, %v1560
    %v1562 = vpop.f32.mrb[0].mxu0
    %v1563 = vadd.f32 %v957, %v1562
    %1564 = vmatprep.mubr.f32.mxu0 0.0
    %1565 = vmatmul.mubr.f32.gmra.mrb[0].mxu0 %v774
    %v1566 = vpop.f32.mrb[0].mxu0
    %v1567 = vadd.f32 %v953, %v1566
    %v1568 = vpop.f32.mrb[0].mxu0
    %v1569 = vadd.f32 %v957, %v1568
    %1570 = vmatprep.mubr.f32.mxu0 0.0
    %1571 = vmatmul.mubr.f32.gmra.mrb[0].mxu0 %v775
    %v1572 = vpop.f32.mrb[0].mxu0
    %v1573 = vadd.f32 %v953, %v1572
    %v1574 = vpop.f32.mrb[0].mxu0
    %v1575 = vadd.f32 %v957, %v1574
    %1576 = vmatprep.mubr.f32.mxu0 0.0
    %1577 = vmatmul.mubr.f32.gmra.mrb[0].mxu0 %v776
    %v1578 = vpop.f32.mrb[0].mxu0
    %v1579 = vadd.f32 %v953, %v1578
    %v1580 = vpop.f32.mrb[0].mxu0
    %v1581 = vadd.f32 %v957, %v1580
    %1582 = vmatprep.mubr.f32.mxu0 0.0
    %1583 = vmatmul.mubr.f32.gmra.mrb[0].mxu0 %v777
    %v1584 = vpop.f32.mrb[0].mxu0
    %v1585 = vadd.f32 %v953, %v1584
    %v1586 = vpop.f32.mrb[0].mxu0
    %v1587 = vadd.f32 %v957, %v1586
    %1588 = vmatprep.mubr.f32.mxu0 0.0
    %1589 = vmatmul.mubr.f32.gmra.mrb[0].mxu0 %v778
    %v1590 = vpop.f32.mrb[0].mxu0
    %v1591 = vadd.f32 %v953, %v1590
    %v1592 = vpop.f32.mrb[0].mxu0
    %v1593 = vadd.f32 %v957, %v1592
    %1594 = vmatprep.mubr.f32.mxu0 0.0
    %1595 = vmatmul.mubr.f32.gmra.mrb[0].mxu0 %v779
    %v1596 = vpop.f32.mrb[0].mxu0
    %v1597 = vadd.f32 %v953, %v1596
    %v1598 = vpop.f32.mrb[0].mxu0
    %v1599 = vadd.f32 %v957, %v1598
    %1600 = vmatprep.mubr.f32.mxu0 0.0
    %1601 = vmatmul.mubr.f32.gmra.mrb[0].mxu0 %v780
    %v1602 = vpop.f32.mrb[0].mxu0
    %v1603 = vadd.f32 %v953, %v1602
    %v1604 = vpop.f32.mrb[0].mxu0
    %v1605 = vadd.f32 %v957, %v1604
    %1606 = vmatprep.mubr.f32.mxu0 0.0
    %1607 = vmatmul.mubr.f32.gmra.mrb[0].mxu0 %v781
    %v1608 = vpop.f32.mrb[0].mxu0
    %v1609 = vadd.f32 %v953, %v1608
    %v1610 = vpop.f32.mrb[0].mxu0
    %v1611 = vadd.f32 %v957, %v1610
    %1612 = vmatprep.mubr.f32.mxu0 0.0
    %1613 = vmatmul.mubr.f32.gmra.mrb[0].mxu0 %v782
    %v1614 = vpop.f32.mrb[0].mxu0
    %v1615 = vadd.f32 %v953, %v1614
    %v1616 = vpop.f32.mrb[0].mxu0
    %v1617 = vadd.f32 %v957, %v1616
    %1618 = vmatprep.mubr.f32.mxu0 0.0
    %1619 = vmatmul.mubr.f32.gmra.mrb[0].mxu0 %v783
    %v1620 = vpop.f32.mrb[0].mxu0
    %v1621 = vadd.f32 %v953, %v1620
    %v1622 = vpop.f32.mrb[0].mxu0
    %v1623 = vadd.f32 %v957, %v1622
    %1624 = vmatprep.mubr.f32.mxu0 0.0
    %1625 = vmatmul.mubr.f32.gmra.mrb[0].mxu0 %v784
    %v1626 = vpop.f32.mrb[0].mxu0
    %v1627 = vadd.f32 %v953, %v1626
    %v1628 = vpop.f32.mrb[0].mxu0
    %v1629 = vadd.f32 %v957, %v1628
    %1630 = vmatprep.mubr.f32.mxu0 0.0
    %1631 = vmatmul.mubr.f32.gmra.mrb[0].mxu0 %v785
    %v1632 = vpop.f32.mrb[0].mxu0
    %v1633 = vadd.f32 %v953, %v1632
    %v1634 = vpop.f32.mrb[0].mxu0
    %v1635 = vadd.f32 %v957, %v1634
    %1636 = vmatprep.mubr.f32.mxu0 0.0
    %1637 = vmatmul.mubr.f32.gmra.mrb[0].mxu0 %v786
    %v1638 = vpop.f32.mrb[0].mxu0
    %v1639 = vadd.f32 %v953, %v1638
    %v1640 = vpop.f32.mrb[0].mxu0
    %v1641 = vadd.f32 %v957, %v1640
    %1642 = vmatprep.mubr.f32.mxu0 0.0
    %1643 = vmatmul.mubr.f32.gmra.mrb[0].mxu0 %v787
    %v1644 = vpop.f32.mrb[0].mxu0
    %v1645 = vadd.f32 %v953, %v1644
    %v1646 = vpop.f32.mrb[0].mxu0
    %v1647 = vadd.f32 %v957, %v1646
    %1648 = vmatprep.mubr.f32.mxu0 0.0
    %1649 = vmatmul.mubr.f32.gmra.mrb[0].mxu0 %v788
    %v1650 = vpop.f32.mrb[0].mxu0
    %v1651 = vadd.f32 %v953, %v1650
    %v1652 = vpop.f32.mrb[0].mxu0
    %v1653 = vadd.f32 %v957, %v1652
    %1654 = vmatprep.mubr.f32.mxu0 0.0
    %1655 = vmatmul.mubr.f32.gmra.mrb[0].mxu0 %v789
    %v1656 = vpop.f32.mrb[0].mxu0
    %v1657 = vadd.f32 %v953, %v1656
    %v1658 = vpop.f32.mrb[0].mxu0
    %v1659 = vadd.f32 %v957, %v1658
    %1660 = vmatprep.mubr.f32.mxu0 0.0
    %1661 = vmatmul.mubr.f32.gmra.mrb[0].mxu0 %v790
    %v1662 = vpop.f32.mrb[0].mxu0
    %v1663 = vadd.f32 %v953, %v1662
    %v1664 = vpop.f32.mrb[0].mxu0
    %v1665 = vadd.f32 %v957, %v1664
    %1666 = vmatprep.mubr.f32.mxu0 0.0
    %1667 = vmatmul.mubr.f32.gmra.mrb[0].mxu0 %v791
    %v1668 = vpop.f32.mrb[0].mxu0
    %v1669 = vadd.f32 %v953, %v1668
    %v1670 = vpop.f32.mrb[0].mxu0
    %v1671 = vadd.f32 %v957, %v1670
    %1672 = vmatprep.mubr.f32.mxu0 0.0
    %1673 = vmatmul.mubr.f32.gmra.mrb[0].mxu0 %v792
    %v1674 = vpop.f32.mrb[0].mxu0
    %v1675 = vadd.f32 %v953, %v1674
    %v1676 = vpop.f32.mrb[0].mxu0
    %v1677 = vadd.f32 %v957, %v1676
    %1678 = vmatprep.mubr.f32.mxu0 0.0
    %1679 = vmatmul.mubr.f32.gmra.mrb[0].mxu0 %v793
    %v1680 = vpop.f32.mrb[0].mxu0
    %v1681 = vadd.f32 %v953, %v1680
    %v1682 = vpop.f32.mrb[0].mxu0
    %v1683 = vadd.f32 %v957, %v1682
    %1684 = vmatprep.mubr.f32.mxu0 0.0
    %1685 = vmatmul.mubr.f32.gmra.mrb[0].mxu0 %v794
    %v1686 = vpop.f32.mrb[0].mxu0
    %v1687 = vadd.f32 %v953, %v1686
    %v1688 = vpop.f32.mrb[0].mxu0
    %v1689 = vadd.f32 %v957, %v1688
    %1690 = vmatprep.mubr.f32.mxu0 0.0
    %1691 = vmatmul.mubr.f32.gmra.mrb[0].mxu0 %v795
    %v1692 = vpop.f32.mrb[0].mxu0
    %v1693 = vadd.f32 %v953, %v1692
    %v1694 = vpop.f32.mrb[0].mxu0
    %v1695 = vadd.f32 %v957, %v1694
    %1696 = vmatprep.mubr.f32.mxu0 0.0
    %1697 = vmatmul.mubr.f32.gmra.mrb[0].mxu0 %v796
    %v1698 = vpop.f32.mrb[0].mxu0
    %v1699 = vadd.f32 %v953, %v1698
    %v1700 = vpop.f32.mrb[0].mxu0
    %v1701 = vadd.f32 %v957, %v1700
    %1702 = vmatprep.mubr.f32.mxu0 0.0
    %1703 = vmatmul.mubr.f32.gmra.mrb[0].mxu0 %v797
    %v1704 = vpop.f32.mrb[0].mxu0
    %v1705 = vadd.f32 %v953, %v1704
    %v1706 = vpop.f32.mrb[0].mxu0
    %v1707 = vadd.f32 %v957, %v1706
    %1708 = vmatprep.mubr.f32.mxu0 0.0
    %1709 = vmatmul.mubr.f32.gmra.mrb[0].mxu0 %v798
    %v1710 = vpop.f32.mrb[0].mxu0
    %v1711 = vadd.f32 %v953, %v1710
    %v1712 = vpop.f32.mrb[0].mxu0
    %v1713 = vadd.f32 %v957, %v1712
    %1714 = vmatprep.mubr.f32.mxu0 0.0
    %1715 = vmatmul.mubr.f32.gmra.mrb[0].mxu0 %v799
    %v1716 = vpop.f32.mrb[0].mxu0
    %v1717 = vadd.f32 %v953, %v1716
    %v1718 = vpop.f32.mrb[0].mxu0
    %v1719 = vadd.f32 %v957, %v1718
    %1720 = vmatprep.mubr.f32.mxu0 0.0
    %1721 = vmatmul.mubr.f32.gmra.mrb[0].mxu0 %v800
    %v1722 = vpop.f32.mrb[0].mxu0
    %v1723 = vadd.f32 %v953, %v1722
    %v1724 = vpop.f32.mrb[0].mxu0
    %v1725 = vadd.f32 %v957, %v1724
    %1726 = vmatprep.mubr.f32.mxu0 0.0
    %1727 = vmatmul.mubr.f32.gmra.mrb[0].mxu0 %v801
    %v1728 = vpop.f32.mrb[0].mxu0
    %v1729 = vadd.f32 %v953, %v1728
    %v1730 = vpop.f32.mrb[0].mxu0
    %v1731 = vadd.f32 %v957, %v1730
    %1732 = vmatprep.mubr.f32.mxu0 0.0
    %1733 = vmatmul.mubr.f32.gmra.mrb[0].mxu0 %v802
    %v1734 = vpop.f32.mrb[0].mxu0
    %v1735 = vadd.f32 %v953, %v1734
    %v1736 = vpop.f32.mrb[0].mxu0
    %v1737 = vadd.f32 %v957, %v1736
    %1738 = vmatprep.mubr.f32.mxu0 0.0
    %1739 = vmatmul.mubr.f32.gmra.mrb[0].mxu0 %v803
    %v1740 = vpop.f32.mrb[0].mxu0
    %v1741 = vadd.f32 %v953, %v1740
    %v1742 = vpop.f32.mrb[0].mxu0
    %v1743 = vadd.f32 %v957, %v1742
    %1744 = vdwg.mxu0
    %1745 = vmatprep.subr.mxu0 %v811
    %1746 = vmatpush1.msra.mxu0 %v810
    %1747 = vmatprep.subr.mxu0 %v819
    %1748 = vmatpush1.msra.mxu0 %v818
    %1749 = vmatprep.subr.mxu0 %v827
    %1750 = vmatpush1.msra.mxu0 %v826
    %1751 = vmatprep.subr.mxu0 %v835
    %1752 = vmatpush1.msra.mxu0 %v834
    %1753 = vmatprep.subr.mxu0 %v843
    %1754 = vmatpush1.msra.mxu0 %v842
    %1755 = vmatprep.subr.mxu0 %v851
    %1756 = vmatpush1.msra.mxu0 %v850
    %1757 = vmatprep.subr.mxu0 %v859
    %1758 = vmatpush1.msra.mxu0 %v858
    %1759 = vmatprep.subr.mxu0 %v867
    %1760 = vmatpush1.msra.mxu0 %v866
    %1761 = vmatprep.subr.mxu0 %v875
    %1762 = vmatpush1.msra.mxu0 %v874
    %1763 = vmatprep.subr.mxu0 %v883
    %1764 = vmatpush1.msra.mxu0 %v882
    %1765 = vmatprep.subr.mxu0 %v891
    %1766 = vmatpush1.msra.mxu0 %v890
    %1767 = vmatprep.subr.mxu0 %v899
    %1768 = vmatpush1.msra.mxu0 %v898
    %1769 = vmatprep.subr.mxu0 %v907
    %1770 = vmatpush1.msra.mxu0 %v906
    %1771 = vmatprep.subr.mxu0 %v915
    %1772 = vmatpush1.msra.mxu0 %v914
    %1773 = vmatprep.subr.mxu0 %v923
    %1774 = vmatpush1.msra.mxu0 %v922
    %1775 = vmatprep.subr.mxu0 %v931
    %1776 = vmatpush1.msra.mxu0 %v930
    %1777 = vmatprep.subr.mxu0 0.0
    %1778 = vmatpush1.msra.mxu0 0.0
    %1779 = vmatprep.subr.mxu0 0.0
    %1780 = vmatpush1.msra.mxu0 0.0
    %1781 = vmatprep.subr.mxu0 0.0
    %1782 = vmatpush1.msra.mxu0 0.0
    %1783 = vmatprep.subr.mxu0 0.0
    %1784 = vmatpush1.msra.mxu0 0.0
    %1785 = vmatprep.subr.mxu0 0.0
    %1786 = vmatpush1.msra.mxu0 0.0
    %1787 = vmatprep.subr.mxu0 0.0
    %1788 = vmatpush1.msra.mxu0 0.0
    %1789 = vmatprep.subr.mxu0 0.0
    %1790 = vmatpush1.msra.mxu0 0.0
    %1791 = vmatprep.subr.mxu0 0.0
    %1792 = vmatpush1.msra.mxu0 0.0
    %1793 = vmatprep.subr.mxu0 0.0
    %1794 = vmatpush1.msra.mxu0 0.0
    %1795 = vmatprep.subr.mxu0 0.0
    %1796 = vmatpush1.msra.mxu0 0.0
    %1797 = vmatprep.subr.mxu0 0.0
    %1798 = vmatpush1.msra.mxu0 0.0
    %1799 = vmatprep.subr.mxu0 0.0
    %1800 = vmatpush1.msra.mxu0 0.0
    %1801 = vmatprep.subr.mxu0 0.0
    %1802 = vmatpush1.msra.mxu0 0.0
    %1803 = vmatprep.subr.mxu0 0.0
    %1804 = vmatpush1.msra.mxu0 0.0
    %1805 = vmatprep.subr.mxu0 0.0
    %1806 = vmatpush1.msra.mxu0 0.0
    %1807 = vmatprep.subr.mxu0 0.0
    %1808 = vmatpush1.msra.mxu0 0.0
    %1809 = vmatprep.mubr.f32.mxu0 0.0
    %1810 = vmatmul.mubr.f32.gmra.mrb[0].mxu0 %v772
    %v1811 = vpop.f32.mrb[0].mxu0
    %v1812 = vadd.f32 %v961, %v1811
    %v1813 = vpop.f32.mrb[0].mxu0
    %v1814 = vadd.f32 %v965, %v1813
    %1815 = vmatprep.mubr.f32.mxu0 0.0
    %1816 = vmatmul.mubr.f32.gmra.mrb[0].mxu0 %v773
    %v1817 = vpop.f32.mrb[0].mxu0
    %v1818 = vadd.f32 %v961, %v1817
    %v1819 = vpop.f32.mrb[0].mxu0
    %v1820 = vadd.f32 %v965, %v1819
    %1821 = vmatprep.mubr.f32.mxu0 0.0
    %1822 = vmatmul.mubr.f32.gmra.mrb[0].mxu0 %v774
    %v1823 = vpop.f32.mrb[0].mxu0
    %v1824 = vadd.f32 %v961, %v1823
    %v1825 = vpop.f32.mrb[0].mxu0
    %v1826 = vadd.f32 %v965, %v1825
    %1827 = vmatprep.mubr.f32.mxu0 0.0
    %1828 = vmatmul.mubr.f32.gmra.mrb[0].mxu0 %v775
    %v1829 = vpop.f32.mrb[0].mxu0
    %v1830 = vadd.f32 %v961, %v1829
    %v1831 = vpop.f32.mrb[0].mxu0
    %v1832 = vadd.f32 %v965, %v1831
    %1833 = vmatprep.mubr.f32.mxu0 0.0
    %1834 = vmatmul.mubr.f32.gmra.mrb[0].mxu0 %v776
    %v1835 = vpop.f32.mrb[0].mxu0
    %v1836 = vadd.f32 %v961, %v1835
    %v1837 = vpop.f32.mrb[0].mxu0
    %v1838 = vadd.f32 %v965, %v1837
    %1839 = vmatprep.mubr.f32.mxu0 0.0
    %1840 = vmatmul.mubr.f32.gmra.mrb[0].mxu0 %v777
    %v1841 = vpop.f32.mrb[0].mxu0
    %v1842 = vadd.f32 %v961, %v1841
    %v1843 = vpop.f32.mrb[0].mxu0
    %v1844 = vadd.f32 %v965, %v1843
    %1845 = vmatprep.mubr.f32.mxu0 0.0
    %1846 = vmatmul.mubr.f32.gmra.mrb[0].mxu0 %v778
    %v1847 = vpop.f32.mrb[0].mxu0
    %v1848 = vadd.f32 %v961, %v1847
    %v1849 = vpop.f32.mrb[0].mxu0
    %v1850 = vadd.f32 %v965, %v1849
    %1851 = vmatprep.mubr.f32.mxu0 0.0
    %1852 = vmatmul.mubr.f32.gmra.mrb[0].mxu0 %v779
    %v1853 = vpop.f32.mrb[0].mxu0
    %v1854 = vadd.f32 %v961, %v1853
    %v1855 = vpop.f32.mrb[0].mxu0
    %v1856 = vadd.f32 %v965, %v1855
    %1857 = vmatprep.mubr.f32.mxu0 0.0
    %1858 = vmatmul.mubr.f32.gmra.mrb[0].mxu0 %v780
    %v1859 = vpop.f32.mrb[0].mxu0
    %v1860 = vadd.f32 %v961, %v1859
    %v1861 = vpop.f32.mrb[0].mxu0
    %v1862 = vadd.f32 %v965, %v1861
    %1863 = vmatprep.mubr.f32.mxu0 0.0
    %1864 = vmatmul.mubr.f32.gmra.mrb[0].mxu0 %v781
    %v1865 = vpop.f32.mrb[0].mxu0
    %v1866 = vadd.f32 %v961, %v1865
    %v1867 = vpop.f32.mrb[0].mxu0
    %v1868 = vadd.f32 %v965, %v1867
    %1869 = vmatprep.mubr.f32.mxu0 0.0
    %1870 = vmatmul.mubr.f32.gmra.mrb[0].mxu0 %v782
    %v1871 = vpop.f32.mrb[0].mxu0
    %v1872 = vadd.f32 %v961, %v1871
    %v1873 = vpop.f32.mrb[0].mxu0
    %v1874 = vadd.f32 %v965, %v1873
    %1875 = vmatprep.mubr.f32.mxu0 0.0
    %1876 = vmatmul.mubr.f32.gmra.mrb[0].mxu0 %v783
    %v1877 = vpop.f32.mrb[0].mxu0
    %v1878 = vadd.f32 %v961, %v1877
    %v1879 = vpop.f32.mrb[0].mxu0
    %v1880 = vadd.f32 %v965, %v1879
    %1881 = vmatprep.mubr.f32.mxu0 0.0
    %1882 = vmatmul.mubr.f32.gmra.mrb[0].mxu0 %v784
    %v1883 = vpop.f32.mrb[0].mxu0
    %v1884 = vadd.f32 %v961, %v1883
    %v1885 = vpop.f32.mrb[0].mxu0
    %v1886 = vadd.f32 %v965, %v1885
    %1887 = vmatprep.mubr.f32.mxu0 0.0
    %1888 = vmatmul.mubr.f32.gmra.mrb[0].mxu0 %v785
    %v1889 = vpop.f32.mrb[0].mxu0
    %v1890 = vadd.f32 %v961, %v1889
    %v1891 = vpop.f32.mrb[0].mxu0
    %v1892 = vadd.f32 %v965, %v1891
    %1893 = vmatprep.mubr.f32.mxu0 0.0
    %1894 = vmatmul.mubr.f32.gmra.mrb[0].mxu0 %v786
    %v1895 = vpop.f32.mrb[0].mxu0
    %v1896 = vadd.f32 %v961, %v1895
    %v1897 = vpop.f32.mrb[0].mxu0
    %v1898 = vadd.f32 %v965, %v1897
    %1899 = vmatprep.mubr.f32.mxu0 0.0
    %1900 = vmatmul.mubr.f32.gmra.mrb[0].mxu0 %v787
    %v1901 = vpop.f32.mrb[0].mxu0
    %v1902 = vadd.f32 %v961, %v1901
    %v1903 = vpop.f32.mrb[0].mxu0
    %v1904 = vadd.f32 %v965, %v1903
    %1905 = vmatprep.mubr.f32.mxu0 0.0
    %1906 = vmatmul.mubr.f32.gmra.mrb[0].mxu0 %v788
    %v1907 = vpop.f32.mrb[0].mxu0
    %v1908 = vadd.f32 %v961, %v1907
    %v1909 = vpop.f32.mrb[0].mxu0
    %v1910 = vadd.f32 %v965, %v1909
    %1911 = vmatprep.mubr.f32.mxu0 0.0
    %1912 = vmatmul.mubr.f32.gmra.mrb[0].mxu0 %v789
    %v1913 = vpop.f32.mrb[0].mxu0
    %v1914 = vadd.f32 %v961, %v1913
    %v1915 = vpop.f32.mrb[0].mxu0
    %v1916 = vadd.f32 %v965, %v1915
    %1917 = vmatprep.mubr.f32.mxu0 0.0
    %1918 = vmatmul.mubr.f32.gmra.mrb[0].mxu0 %v790
    %v1919 = vpop.f32.mrb[0].mxu0
    %v1920 = vadd.f32 %v961, %v1919
    %v1921 = vpop.f32.mrb[0].mxu0
    %v1922 = vadd.f32 %v965, %v1921
    %1923 = vmatprep.mubr.f32.mxu0 0.0
    %1924 = vmatmul.mubr.f32.gmra.mrb[0].mxu0 %v791
    %v1925 = vpop.f32.mrb[0].mxu0
    %v1926 = vadd.f32 %v961, %v1925
    %v1927 = vpop.f32.mrb[0].mxu0
    %v1928 = vadd.f32 %v965, %v1927
    %1929 = vmatprep.mubr.f32.mxu0 0.0
    %1930 = vmatmul.mubr.f32.gmra.mrb[0].mxu0 %v792
    %v1931 = vpop.f32.mrb[0].mxu0
    %v1932 = vadd.f32 %v961, %v1931
    %v1933 = vpop.f32.mrb[0].mxu0
    %v1934 = vadd.f32 %v965, %v1933
    %1935 = vmatprep.mubr.f32.mxu0 0.0
    %1936 = vmatmul.mubr.f32.gmra.mrb[0].mxu0 %v793
    %v1937 = vpop.f32.mrb[0].mxu0
    %v1938 = vadd.f32 %v961, %v1937
    %v1939 = vpop.f32.mrb[0].mxu0
    %v1940 = vadd.f32 %v965, %v1939
    %1941 = vmatprep.mubr.f32.mxu0 0.0
    %1942 = vmatmul.mubr.f32.gmra.mrb[0].mxu0 %v794
    %v1943 = vpop.f32.mrb[0].mxu0
    %v1944 = vadd.f32 %v961, %v1943
    %v1945 = vpop.f32.mrb[0].mxu0
    %v1946 = vadd.f32 %v965, %v1945
    %1947 = vmatprep.mubr.f32.mxu0 0.0
    %1948 = vmatmul.mubr.f32.gmra.mrb[0].mxu0 %v795
    %v1949 = vpop.f32.mrb[0].mxu0
    %v1950 = vadd.f32 %v961, %v1949
    %v1951 = vpop.f32.mrb[0].mxu0
    %v1952 = vadd.f32 %v965, %v1951
    %1953 = vmatprep.mubr.f32.mxu0 0.0
    %1954 = vmatmul.mubr.f32.gmra.mrb[0].mxu0 %v796
    %v1955 = vpop.f32.mrb[0].mxu0
    %v1956 = vadd.f32 %v961, %v1955
    %v1957 = vpop.f32.mrb[0].mxu0
    %v1958 = vadd.f32 %v965, %v1957
    %1959 = vmatprep.mubr.f32.mxu0 0.0
    %1960 = vmatmul.mubr.f32.gmra.mrb[0].mxu0 %v797
    %v1961 = vpop.f32.mrb[0].mxu0
    %v1962 = vadd.f32 %v961, %v1961
    %v1963 = vpop.f32.mrb[0].mxu0
    %v1964 = vadd.f32 %v965, %v1963
    %1965 = vmatprep.mubr.f32.mxu0 0.0
    %1966 = vmatmul.mubr.f32.gmra.mrb[0].mxu0 %v798
    %v1967 = vpop.f32.mrb[0].mxu0
    %v1968 = vadd.f32 %v961, %v1967
    %v1969 = vpop.f32.mrb[0].mxu0
    %v1970 = vadd.f32 %v965, %v1969
    %1971 = vmatprep.mubr.f32.mxu0 0.0
    %1972 = vmatmul.mubr.f32.gmra.mrb[0].mxu0 %v799
    %v1973 = vpop.f32.mrb[0].mxu0
    %v1974 = vadd.f32 %v961, %v1973
    %v1975 = vpop.f32.mrb[0].mxu0
    %v1976 = vadd.f32 %v965, %v1975
    %1977 = vmatprep.mubr.f32.mxu0 0.0
    %1978 = vmatmul.mubr.f32.gmra.mrb[0].mxu0 %v800
    %v1979 = vpop.f32.mrb[0].mxu0
    %v1980 = vadd.f32 %v961, %v1979
    %v1981 = vpop.f32.mrb[0].mxu0
    %v1982 = vadd.f32 %v965, %v1981
    %1983 = vmatprep.mubr.f32.mxu0 0.0
    %1984 = vmatmul.mubr.f32.gmra.mrb[0].mxu0 %v801
    %v1985 = vpop.f32.mrb[0].mxu0
    %v1986 = vadd.f32 %v961, %v1985
    %v1987 = vpop.f32.mrb[0].mxu0
    %v1988 = vadd.f32 %v965, %v1987
    %1989 = vmatprep.mubr.f32.mxu0 0.0
    %1990 = vmatmul.mubr.f32.gmra.mrb[0].mxu0 %v802
    %v1991 = vpop.f32.mrb[0].mxu0
    %v1992 = vadd.f32 %v961, %v1991
    %v1993 = vpop.f32.mrb[0].mxu0
    %v1994 = vadd.f32 %v965, %v1993
    %1995 = vmatprep.mubr.f32.mxu0 0.0
    %1996 = vmatmul.mubr.f32.gmra.mrb[0].mxu0 %v803
    %v1997 = vpop.f32.mrb[0].mxu0
    %v1998 = vadd.f32 %v961, %v1997
    %v1999 = vpop.f32.mrb[0].mxu0
    %v2000 = vadd.f32 %v965, %v1999
    %2001 = vdwg.mxu0
    %v2002 = vmax.f32 %v1041, 0.0
    %v2003 = vmax.f32 %v1043, 0.0
    %v2004 = vmax.f32 %v1298, 0.0
    %v2005 = vmax.f32 %v1300, 0.0
    %v2006 = vmax.f32 %v1555, 0.0
    %v2007 = vmax.f32 %v1557, 0.0
    %v2008 = vmax.f32 %v1812, 0.0
    %v2009 = vmax.f32 %v1814, 0.0
    %v2010 = vmax.f32 %v1047, 0.0
    %v2011 = vmax.f32 %v1049, 0.0
    %v2012 = vmax.f32 %v1304, 0.0
    %v2013 = vmax.f32 %v1306, 0.0
    %v2014 = vmax.f32 %v1561, 0.0
    %v2015 = vmax.f32 %v1563, 0.0
    %v2016 = vmax.f32 %v1818, 0.0
    %v2017 = vmax.f32 %v1820, 0.0
    %v2018 = vmax.f32 %v1053, 0.0
    %v2019 = vmax.f32 %v1055, 0.0
    %v2020 = vmax.f32 %v1310, 0.0
    %v2021 = vmax.f32 %v1312, 0.0
    %v2022 = vmax.f32 %v1567, 0.0
    %v2023 = vmax.f32 %v1569, 0.0
    %v2024 = vmax.f32 %v1824, 0.0
    %v2025 = vmax.f32 %v1826, 0.0
    %v2026 = vmax.f32 %v1059, 0.0
    %v2027 = vmax.f32 %v1061, 0.0
    %v2028 = vmax.f32 %v1316, 0.0
    %v2029 = vmax.f32 %v1318, 0.0
    %v2030 = vmax.f32 %v1573, 0.0
    %v2031 = vmax.f32 %v1575, 0.0
    %v2032 = vmax.f32 %v1830, 0.0
    %v2033 = vmax.f32 %v1832, 0.0
    %v2034 = vmax.f32 %v1065, 0.0
    %v2035 = vmax.f32 %v1067, 0.0
    %v2036 = vmax.f32 %v1322, 0.0
    %v2037 = vmax.f32 %v1324, 0.0
    %v2038 = vmax.f32 %v1579, 0.0
    %v2039 = vmax.f32 %v1581, 0.0
    %v2040 = vmax.f32 %v1836, 0.0
    %v2041 = vmax.f32 %v1838, 0.0
    %v2042 = vmax.f32 %v1071, 0.0
    %v2043 = vmax.f32 %v1073, 0.0
    %v2044 = vmax.f32 %v1328, 0.0
    %v2045 = vmax.f32 %v1330, 0.0
    %v2046 = vmax.f32 %v1585, 0.0
    %v2047 = vmax.f32 %v1587, 0.0
    %v2048 = vmax.f32 %v1842, 0.0
    %v2049 = vmax.f32 %v1844, 0.0
    %v2050 = vmax.f32 %v1077, 0.0
    %v2051 = vmax.f32 %v1079, 0.0
    %v2052 = vmax.f32 %v1334, 0.0
    %v2053 = vmax.f32 %v1336, 0.0
    %v2054 = vmax.f32 %v1591, 0.0
    %v2055 = vmax.f32 %v1593, 0.0
    %v2056 = vmax.f32 %v1848, 0.0
    %v2057 = vmax.f32 %v1850, 0.0
    %v2058 = vmax.f32 %v1083, 0.0
    %v2059 = vmax.f32 %v1085, 0.0
    %v2060 = vmax.f32 %v1340, 0.0
    %v2061 = vmax.f32 %v1342, 0.0
    %v2062 = vmax.f32 %v1597, 0.0
    %v2063 = vmax.f32 %v1599, 0.0
    %v2064 = vmax.f32 %v1854, 0.0
    %v2065 = vmax.f32 %v1856, 0.0
    %v2066 = vmax.f32 %v1089, 0.0
    %v2067 = vmax.f32 %v1091, 0.0
    %v2068 = vmax.f32 %v1346, 0.0
    %v2069 = vmax.f32 %v1348, 0.0
    %v2070 = vmax.f32 %v1603, 0.0
    %v2071 = vmax.f32 %v1605, 0.0
    %v2072 = vmax.f32 %v1860, 0.0
    %v2073 = vmax.f32 %v1862, 0.0
    %v2074 = vmax.f32 %v1095, 0.0
    %v2075 = vmax.f32 %v1097, 0.0
    %v2076 = vmax.f32 %v1352, 0.0
    %v2077 = vmax.f32 %v1354, 0.0
    %v2078 = vmax.f32 %v1609, 0.0
    %v2079 = vmax.f32 %v1611, 0.0
    %v2080 = vmax.f32 %v1866, 0.0
    %v2081 = vmax.f32 %v1868, 0.0
    %v2082 = vmax.f32 %v1101, 0.0
    %v2083 = vmax.f32 %v1103, 0.0
    %v2084 = vmax.f32 %v1358, 0.0
    %v2085 = vmax.f32 %v1360, 0.0
    %v2086 = vmax.f32 %v1615, 0.0
    %v2087 = vmax.f32 %v1617, 0.0
    %v2088 = vmax.f32 %v1872, 0.0
    %v2089 = vmax.f32 %v1874, 0.0
    %v2090 = vmax.f32 %v1107, 0.0
    %v2091 = vmax.f32 %v1109, 0.0
    %v2092 = vmax.f32 %v1364, 0.0
    %v2093 = vmax.f32 %v1366, 0.0
    %v2094 = vmax.f32 %v1621, 0.0
    %v2095 = vmax.f32 %v1623, 0.0
    %v2096 = vmax.f32 %v1878, 0.0
    %v2097 = vmax.f32 %v1880, 0.0
    %v2098 = vmax.f32 %v1113, 0.0
    %v2099 = vmax.f32 %v1115, 0.0
    %v2100 = vmax.f32 %v1370, 0.0
    %v2101 = vmax.f32 %v1372, 0.0
    %v2102 = vmax.f32 %v1627, 0.0
    %v2103 = vmax.f32 %v1629, 0.0
    %v2104 = vmax.f32 %v1884, 0.0
    %v2105 = vmax.f32 %v1886, 0.0
    %v2106 = vmax.f32 %v1119, 0.0
    %v2107 = vmax.f32 %v1121, 0.0
    %v2108 = vmax.f32 %v1376, 0.0
    %v2109 = vmax.f32 %v1378, 0.0
    %v2110 = vmax.f32 %v1633, 0.0
    %v2111 = vmax.f32 %v1635, 0.0
    %v2112 = vmax.f32 %v1890, 0.0
    %v2113 = vmax.f32 %v1892, 0.0
    %v2114 = vmax.f32 %v1125, 0.0
    %v2115 = vmax.f32 %v1127, 0.0
    %v2116 = vmax.f32 %v1382, 0.0
    %v2117 = vmax.f32 %v1384, 0.0
    %v2118 = vmax.f32 %v1639, 0.0
    %v2119 = vmax.f32 %v1641, 0.0
    %v2120 = vmax.f32 %v1896, 0.0
    %v2121 = vmax.f32 %v1898, 0.0
    %v2122 = vmax.f32 %v1131, 0.0
    %v2123 = vmax.f32 %v1133, 0.0
    %v2124 = vmax.f32 %v1388, 0.0
    %v2125 = vmax.f32 %v1390, 0.0
    %v2126 = vmax.f32 %v1645, 0.0
    %v2127 = vmax.f32 %v1647, 0.0
    %v2128 = vmax.f32 %v1902, 0.0
    %v2129 = vmax.f32 %v1904, 0.0
    %v2130 = vmax.f32 %v1137, 0.0
    %v2131 = vmax.f32 %v1139, 0.0
    %v2132 = vmax.f32 %v1394, 0.0
    %v2133 = vmax.f32 %v1396, 0.0
    %v2134 = vmax.f32 %v1651, 0.0
    %v2135 = vmax.f32 %v1653, 0.0
    %v2136 = vmax.f32 %v1908, 0.0
    %v2137 = vmax.f32 %v1910, 0.0
    %v2138 = vmax.f32 %v1143, 0.0
    %v2139 = vmax.f32 %v1145, 0.0
    %v2140 = vmax.f32 %v1400, 0.0
    %v2141 = vmax.f32 %v1402, 0.0
    %v2142 = vmax.f32 %v1657, 0.0
    %v2143 = vmax.f32 %v1659, 0.0
    %v2144 = vmax.f32 %v1914, 0.0
    %v2145 = vmax.f32 %v1916, 0.0
    %v2146 = vmax.f32 %v1149, 0.0
    %v2147 = vmax.f32 %v1151, 0.0
    %v2148 = vmax.f32 %v1406, 0.0
    %v2149 = vmax.f32 %v1408, 0.0
    %v2150 = vmax.f32 %v1663, 0.0
    %v2151 = vmax.f32 %v1665, 0.0
    %v2152 = vmax.f32 %v1920, 0.0
    %v2153 = vmax.f32 %v1922, 0.0
    %v2154 = vmax.f32 %v1155, 0.0
    %v2155 = vmax.f32 %v1157, 0.0
    %v2156 = vmax.f32 %v1412, 0.0
    %v2157 = vmax.f32 %v1414, 0.0
    %v2158 = vmax.f32 %v1669, 0.0
    %v2159 = vmax.f32 %v1671, 0.0
    %v2160 = vmax.f32 %v1926, 0.0
    %v2161 = vmax.f32 %v1928, 0.0
    %v2162 = vmax.f32 %v1161, 0.0
    %v2163 = vmax.f32 %v1163, 0.0
    %v2164 = vmax.f32 %v1418, 0.0
    %v2165 = vmax.f32 %v1420, 0.0
    %v2166 = vmax.f32 %v1675, 0.0
    %v2167 = vmax.f32 %v1677, 0.0
    %v2168 = vmax.f32 %v1932, 0.0
    %v2169 = vmax.f32 %v1934, 0.0
    %v2170 = vmax.f32 %v1167, 0.0
    %v2171 = vmax.f32 %v1169, 0.0
    %v2172 = vmax.f32 %v1424, 0.0
    %v2173 = vmax.f32 %v1426, 0.0
    %v2174 = vmax.f32 %v1681, 0.0
    %v2175 = vmax.f32 %v1683, 0.0
    %v2176 = vmax.f32 %v1938, 0.0
    %v2177 = vmax.f32 %v1940, 0.0
    %v2178 = vmax.f32 %v1173, 0.0
    %v2179 = vmax.f32 %v1175, 0.0
    %v2180 = vmax.f32 %v1430, 0.0
    %v2181 = vmax.f32 %v1432, 0.0
    %v2182 = vmax.f32 %v1687, 0.0
    %v2183 = vmax.f32 %v1689, 0.0
    %v2184 = vmax.f32 %v1944, 0.0
    %v2185 = vmax.f32 %v1946, 0.0
    %v2186 = vmax.f32 %v1179, 0.0
    %v2187 = vmax.f32 %v1181, 0.0
    %v2188 = vmax.f32 %v1436, 0.0
    %v2189 = vmax.f32 %v1438, 0.0
    %v2190 = vmax.f32 %v1693, 0.0
    %v2191 = vmax.f32 %v1695, 0.0
    %v2192 = vmax.f32 %v1950, 0.0
    %v2193 = vmax.f32 %v1952, 0.0
    %v2194 = vmax.f32 %v1185, 0.0
    %v2195 = vmax.f32 %v1187, 0.0
    %v2196 = vmax.f32 %v1442, 0.0
    %v2197 = vmax.f32 %v1444, 0.0
    %v2198 = vmax.f32 %v1699, 0.0
    %v2199 = vmax.f32 %v1701, 0.0
    %v2200 = vmax.f32 %v1956, 0.0
    %v2201 = vmax.f32 %v1958, 0.0
    %v2202 = vmax.f32 %v1191, 0.0
    %v2203 = vmax.f32 %v1193, 0.0
    %v2204 = vmax.f32 %v1448, 0.0
    %v2205 = vmax.f32 %v1450, 0.0
    %v2206 = vmax.f32 %v1705, 0.0
    %v2207 = vmax.f32 %v1707, 0.0
    %v2208 = vmax.f32 %v1962, 0.0
    %v2209 = vmax.f32 %v1964, 0.0
    %v2210 = vmax.f32 %v1197, 0.0
    %v2211 = vmax.f32 %v1199, 0.0
    %v2212 = vmax.f32 %v1454, 0.0
    %v2213 = vmax.f32 %v1456, 0.0
    %v2214 = vmax.f32 %v1711, 0.0
    %v2215 = vmax.f32 %v1713, 0.0
    %v2216 = vmax.f32 %v1968, 0.0
    %v2217 = vmax.f32 %v1970, 0.0
    %v2218 = vmax.f32 %v1203, 0.0
    %v2219 = vmax.f32 %v1205, 0.0
    %v2220 = vmax.f32 %v1460, 0.0
    %v2221 = vmax.f32 %v1462, 0.0
    %v2222 = vmax.f32 %v1717, 0.0
    %v2223 = vmax.f32 %v1719, 0.0
    %v2224 = vmax.f32 %v1974, 0.0
    %v2225 = vmax.f32 %v1976, 0.0
    %v2226 = vmax.f32 %v1209, 0.0
    %v2227 = vmax.f32 %v1211, 0.0
    %v2228 = vmax.f32 %v1466, 0.0
    %v2229 = vmax.f32 %v1468, 0.0
    %v2230 = vmax.f32 %v1723, 0.0
    %v2231 = vmax.f32 %v1725, 0.0
    %v2232 = vmax.f32 %v1980, 0.0
    %v2233 = vmax.f32 %v1982, 0.0
    %v2234 = vmax.f32 %v1215, 0.0
    %v2235 = vmax.f32 %v1217, 0.0
    %v2236 = vmax.f32 %v1472, 0.0
    %v2237 = vmax.f32 %v1474, 0.0
    %v2238 = vmax.f32 %v1729, 0.0
    %v2239 = vmax.f32 %v1731, 0.0
    %v2240 = vmax.f32 %v1986, 0.0
    %v2241 = vmax.f32 %v1988, 0.0
    %v2242 = vmax.f32 %v1221, 0.0
    %v2243 = vmax.f32 %v1223, 0.0
    %v2244 = vmax.f32 %v1478, 0.0
    %v2245 = vmax.f32 %v1480, 0.0
    %v2246 = vmax.f32 %v1735, 0.0
    %v2247 = vmax.f32 %v1737, 0.0
    %v2248 = vmax.f32 %v1992, 0.0
    %v2249 = vmax.f32 %v1994, 0.0
    %v2250 = vmax.f32 %v1227, 0.0
    %v2251 = vmax.f32 %v1229, 0.0
    %v2252 = vmax.f32 %v1484, 0.0
    %v2253 = vmax.f32 %v1486, 0.0
    %v2254 = vmax.f32 %v1741, 0.0
    %v2255 = vmax.f32 %v1743, 0.0
    %v2256 = vmax.f32 %v1998, 0.0
    %v2257 = vmax.f32 %v2000, 0.0
    %v2258 = vmax.f32 %v2002, %v2010
    %v2259 = vmax.f32 %v2258, %v2018
    %v2260 = vmax.f32 %v2259, %v2026
    %v2261 = vmax.f32 %v2260, %v2034
    %v2262 = vmax.f32 %v2261, %v2042
    %v2263 = vmax.f32 %v2262, %v2050
    %v2264 = vmax.f32 %v2263, %v2058
    %v2265 = vmax.f32 %v2264, %v2066
    %v2266 = vmax.f32 %v2265, %v2074
    %v2267 = vmax.f32 %v2266, %v2082
    %v2268 = vmax.f32 %v2267, %v2090
    %v2269 = vmax.f32 %v2268, %v2098
    %v2270 = vmax.f32 %v2269, %v2106
    %v2271 = vmax.f32 %v2270, %v2114
    %v2272 = vmax.f32 %v2271, %v2122
    %v2273 = vrot.slane %v2272, 4
    %v2274 = vmax.f32 %v2272, %v2273
    %v2275 = vrot.slane %v2274, 2
    %v2276 = vmax.f32 %v2274, %v2275
    %v2277 = vrot.slane %v2276, 1
    %v2278 = vmax.f32 %v2276, %v2277
    %v2279 = vmax.f32 %v2003, %v2011
    %v2280 = vmax.f32 %v2279, %v2019
    %v2281 = vmax.f32 %v2280, %v2027
    %v2282 = vmax.f32 %v2281, %v2035
    %v2283 = vmax.f32 %v2282, %v2043
    %v2284 = vmax.f32 %v2283, %v2051
    %v2285 = vmax.f32 %v2284, %v2059
    %v2286 = vmax.f32 %v2285, %v2067
    %v2287 = vmax.f32 %v2286, %v2075
    %v2288 = vmax.f32 %v2287, %v2083
    %v2289 = vmax.f32 %v2288, %v2091
    %v2290 = vmax.f32 %v2289, %v2099
    %v2291 = vmax.f32 %v2290, %v2107
    %v2292 = vmax.f32 %v2291, %v2115
    %v2293 = vmax.f32 %v2292, %v2123
    %v2294 = vrot.slane %v2293, 4
    %v2295 = vmax.f32 %v2293, %v2294
    %v2296 = vrot.slane %v2295, 2
    %v2297 = vmax.f32 %v2295, %v2296
    %v2298 = vrot.slane %v2297, 1
    %v2299 = vmax.f32 %v2297, %v2298
    %v2300 = vmax.f32 %v2004, %v2012
    %v2301 = vmax.f32 %v2300, %v2020
    %v2302 = vmax.f32 %v2301, %v2028
    %v2303 = vmax.f32 %v2302, %v2036
    %v2304 = vmax.f32 %v2303, %v2044
    %v2305 = vmax.f32 %v2304, %v2052
    %v2306 = vmax.f32 %v2305, %v2060
    %v2307 = vmax.f32 %v2306, %v2068
    %v2308 = vmax.f32 %v2307, %v2076
    %v2309 = vmax.f32 %v2308, %v2084
    %v2310 = vmax.f32 %v2309, %v2092
    %v2311 = vmax.f32 %v2310, %v2100
    %v2312 = vmax.f32 %v2311, %v2108
    %v2313 = vmax.f32 %v2312, %v2116
    %v2314 = vmax.f32 %v2313, %v2124
    %v2315 = vrot.slane %v2314, 4
    %v2316 = vmax.f32 %v2314, %v2315
    %v2317 = vrot.slane %v2316, 2
    %v2318 = vmax.f32 %v2316, %v2317
    %v2319 = vrot.slane %v2318, 1
    %v2320 = vmax.f32 %v2318, %v2319
    %v2321 = vmax.f32 %v2005, %v2013
    %v2322 = vmax.f32 %v2321, %v2021
    %v2323 = vmax.f32 %v2322, %v2029
    %v2324 = vmax.f32 %v2323, %v2037
    %v2325 = vmax.f32 %v2324, %v2045
    %v2326 = vmax.f32 %v2325, %v2053
    %v2327 = vmax.f32 %v2326, %v2061
    %v2328 = vmax.f32 %v2327, %v2069
    %v2329 = vmax.f32 %v2328, %v2077
    %v2330 = vmax.f32 %v2329, %v2085
    %v2331 = vmax.f32 %v2330, %v2093
    %v2332 = vmax.f32 %v2331, %v2101
    %v2333 = vmax.f32 %v2332, %v2109
    %v2334 = vmax.f32 %v2333, %v2117
    %v2335 = vmax.f32 %v2334, %v2125
    %v2336 = vrot.slane %v2335, 4
    %v2337 = vmax.f32 %v2335, %v2336
    %v2338 = vrot.slane %v2337, 2
    %v2339 = vmax.f32 %v2337, %v2338
    %v2340 = vrot.slane %v2339, 1
    %v2341 = vmax.f32 %v2339, %v2340
    %v2342 = vmax.f32 %v2006, %v2014
    %v2343 = vmax.f32 %v2342, %v2022
    %v2344 = vmax.f32 %v2343, %v2030
    %v2345 = vmax.f32 %v2344, %v2038
    %v2346 = vmax.f32 %v2345, %v2046
    %v2347 = vmax.f32 %v2346, %v2054
    %v2348 = vmax.f32 %v2347, %v2062
    %v2349 = vmax.f32 %v2348, %v2070
    %v2350 = vmax.f32 %v2349, %v2078
    %v2351 = vmax.f32 %v2350, %v2086
    %v2352 = vmax.f32 %v2351, %v2094
    %v2353 = vmax.f32 %v2352, %v2102
    %v2354 = vmax.f32 %v2353, %v2110
    %v2355 = vmax.f32 %v2354, %v2118
    %v2356 = vmax.f32 %v2355, %v2126
    %v2357 = vrot.slane %v2356, 4
    %v2358 = vmax.f32 %v2356, %v2357
    %v2359 = vrot.slane %v2358, 2
    %v2360 = vmax.f32 %v2358, %v2359
    %v2361 = vrot.slane %v2360, 1
    %v2362 = vmax.f32 %v2360, %v2361
    %v2363 = vmax.f32 %v2007, %v2015
    %v2364 = vmax.f32 %v2363, %v2023
    %v2365 = vmax.f32 %v2364, %v2031
    %v2366 = vmax.f32 %v2365, %v2039
    %v2367 = vmax.f32 %v2366, %v2047
    %v2368 = vmax.f32 %v2367, %v2055
    %v2369 = vmax.f32 %v2368, %v2063
    %v2370 = vmax.f32 %v2369, %v2071
    %v2371 = vmax.f32 %v2370, %v2079
    %v2372 = vmax.f32 %v2371, %v2087
    %v2373 = vmax.f32 %v2372, %v2095
    %v2374 = vmax.f32 %v2373, %v2103
    %v2375 = vmax.f32 %v2374, %v2111
    %v2376 = vmax.f32 %v2375, %v2119
    %v2377 = vmax.f32 %v2376, %v2127
    %v2378 = vrot.slane %v2377, 4
    %v2379 = vmax.f32 %v2377, %v2378
    %v2380 = vrot.slane %v2379, 2
    %v2381 = vmax.f32 %v2379, %v2380
    %v2382 = vrot.slane %v2381, 1
    %v2383 = vmax.f32 %v2381, %v2382
    %v2384 = vmax.f32 %v2008, %v2016
    %v2385 = vmax.f32 %v2384, %v2024
    %v2386 = vmax.f32 %v2385, %v2032
    %v2387 = vmax.f32 %v2386, %v2040
    %v2388 = vmax.f32 %v2387, %v2048
    %v2389 = vmax.f32 %v2388, %v2056
    %v2390 = vmax.f32 %v2389, %v2064
    %v2391 = vmax.f32 %v2390, %v2072
    %v2392 = vmax.f32 %v2391, %v2080
    %v2393 = vmax.f32 %v2392, %v2088
    %v2394 = vmax.f32 %v2393, %v2096
    %v2395 = vmax.f32 %v2394, %v2104
    %v2396 = vmax.f32 %v2395, %v2112
    %v2397 = vmax.f32 %v2396, %v2120
    %v2398 = vmax.f32 %v2397, %v2128
    %v2399 = vrot.slane %v2398, 4
    %v2400 = vmax.f32 %v2398, %v2399
    %v2401 = vrot.slane %v2400, 2
    %v2402 = vmax.f32 %v2400, %v2401
    %v2403 = vrot.slane %v2402, 1
    %v2404 = vmax.f32 %v2402, %v2403
    %v2405 = vmax.f32 %v2009, %v2017
    %v2406 = vmax.f32 %v2405, %v2025
    %v2407 = vmax.f32 %v2406, %v2033
    %v2408 = vmax.f32 %v2407, %v2041
    %v2409 = vmax.f32 %v2408, %v2049
    %v2410 = vmax.f32 %v2409, %v2057
    %v2411 = vmax.f32 %v2410, %v2065
    %v2412 = vmax.f32 %v2411, %v2073
    %v2413 = vmax.f32 %v2412, %v2081
    %v2414 = vmax.f32 %v2413, %v2089
    %v2415 = vmax.f32 %v2414, %v2097
    %v2416 = vmax.f32 %v2415, %v2105
    %v2417 = vmax.f32 %v2416, %v2113
    %v2418 = vmax.f32 %v2417, %v2121
    %v2419 = vmax.f32 %v2418, %v2129
    %v2420 = vrot.slane %v2419, 4
    %v2421 = vmax.f32 %v2419, %v2420
    %v2422 = vrot.slane %v2421, 2
    %v2423 = vmax.f32 %v2421, %v2422
    %v2424 = vrot.slane %v2423, 1
    %v2425 = vmax.f32 %v2423, %v2424
    %v2426 = vmax.f32 %v2130, %v2138
    %v2427 = vmax.f32 %v2426, %v2146
    %v2428 = vmax.f32 %v2427, %v2154
    %v2429 = vmax.f32 %v2428, %v2162
    %v2430 = vmax.f32 %v2429, %v2170
    %v2431 = vmax.f32 %v2430, %v2178
    %v2432 = vmax.f32 %v2431, %v2186
    %v2433 = vmax.f32 %v2432, %v2194
    %v2434 = vmax.f32 %v2433, %v2202
    %v2435 = vmax.f32 %v2434, %v2210
    %v2436 = vmax.f32 %v2435, %v2218
    %v2437 = vmax.f32 %v2436, %v2226
    %v2438 = vmax.f32 %v2437, %v2234
    %v2439 = vmax.f32 %v2438, %v2242
    %v2440 = vmax.f32 %v2439, %v2250
    %v2441 = vrot.slane %v2440, 4
    %v2442 = vmax.f32 %v2440, %v2441
    %v2443 = vrot.slane %v2442, 2
    %v2444 = vmax.f32 %v2442, %v2443
    %v2445 = vrot.slane %v2444, 1
    %v2446 = vmax.f32 %v2444, %v2445
    %v2447 = vmax.f32 %v2131, %v2139
    %v2448 = vmax.f32 %v2447, %v2147
    %v2449 = vmax.f32 %v2448, %v2155
    %v2450 = vmax.f32 %v2449, %v2163
    %v2451 = vmax.f32 %v2450, %v2171
    %v2452 = vmax.f32 %v2451, %v2179
    %v2453 = vmax.f32 %v2452, %v2187
    %v2454 = vmax.f32 %v2453, %v2195
    %v2455 = vmax.f32 %v2454, %v2203
    %v2456 = vmax.f32 %v2455, %v2211
    %v2457 = vmax.f32 %v2456, %v2219
    %v2458 = vmax.f32 %v2457, %v2227
    %v2459 = vmax.f32 %v2458, %v2235
    %v2460 = vmax.f32 %v2459, %v2243
    %v2461 = vmax.f32 %v2460, %v2251
    %v2462 = vrot.slane %v2461, 4
    %v2463 = vmax.f32 %v2461, %v2462
    %v2464 = vrot.slane %v2463, 2
    %v2465 = vmax.f32 %v2463, %v2464
    %v2466 = vrot.slane %v2465, 1
    %v2467 = vmax.f32 %v2465, %v2466
    %v2468 = vmax.f32 %v2132, %v2140
    %v2469 = vmax.f32 %v2468, %v2148
    %v2470 = vmax.f32 %v2469, %v2156
    %v2471 = vmax.f32 %v2470, %v2164
    %v2472 = vmax.f32 %v2471, %v2172
    %v2473 = vmax.f32 %v2472, %v2180
    %v2474 = vmax.f32 %v2473, %v2188
    %v2475 = vmax.f32 %v2474, %v2196
    %v2476 = vmax.f32 %v2475, %v2204
    %v2477 = vmax.f32 %v2476, %v2212
    %v2478 = vmax.f32 %v2477, %v2220
    %v2479 = vmax.f32 %v2478, %v2228
    %v2480 = vmax.f32 %v2479, %v2236
    %v2481 = vmax.f32 %v2480, %v2244
    %v2482 = vmax.f32 %v2481, %v2252
    %v2483 = vrot.slane %v2482, 4
    %v2484 = vmax.f32 %v2482, %v2483
    %v2485 = vrot.slane %v2484, 2
    %v2486 = vmax.f32 %v2484, %v2485
    %v2487 = vrot.slane %v2486, 1
    %v2488 = vmax.f32 %v2486, %v2487
    %v2489 = vmax.f32 %v2133, %v2141
    %v2490 = vmax.f32 %v2489, %v2149
    %v2491 = vmax.f32 %v2490, %v2157
    %v2492 = vmax.f32 %v2491, %v2165
    %v2493 = vmax.f32 %v2492, %v2173
    %v2494 = vmax.f32 %v2493, %v2181
    %v2495 = vmax.f32 %v2494, %v2189
    %v2496 = vmax.f32 %v2495, %v2197
    %v2497 = vmax.f32 %v2496, %v2205
    %v2498 = vmax.f32 %v2497, %v2213
    %v2499 = vmax.f32 %v2498, %v2221
    %v2500 = vmax.f32 %v2499, %v2229
    %v2501 = vmax.f32 %v2500, %v2237
    %v2502 = vmax.f32 %v2501, %v2245
    %v2503 = vmax.f32 %v2502, %v2253
    %v2504 = vrot.slane %v2503, 4
    %v2505 = vmax.f32 %v2503, %v2504
    %v2506 = vrot.slane %v2505, 2
    %v2507 = vmax.f32 %v2505, %v2506
    %v2508 = vrot.slane %v2507, 1
    %v2509 = vmax.f32 %v2507, %v2508
    %v2510 = vmax.f32 %v2134, %v2142
    %v2511 = vmax.f32 %v2510, %v2150
    %v2512 = vmax.f32 %v2511, %v2158
    %v2513 = vmax.f32 %v2512, %v2166
    %v2514 = vmax.f32 %v2513, %v2174
    %v2515 = vmax.f32 %v2514, %v2182
    %v2516 = vmax.f32 %v2515, %v2190
    %v2517 = vmax.f32 %v2516, %v2198
    %v2518 = vmax.f32 %v2517, %v2206
    %v2519 = vmax.f32 %v2518, %v2214
    %v2520 = vmax.f32 %v2519, %v2222
    %v2521 = vmax.f32 %v2520, %v2230
    %v2522 = vmax.f32 %v2521, %v2238
    %v2523 = vmax.f32 %v2522, %v2246
    %v2524 = vmax.f32 %v2523, %v2254
    %v2525 = vrot.slane %v2524, 4
    %v2526 = vmax.f32 %v2524, %v2525
    %v2527 = vrot.slane %v2526, 2
    %v2528 = vmax.f32 %v2526, %v2527
    %v2529 = vrot.slane %v2528, 1
    %v2530 = vmax.f32 %v2528, %v2529
    %v2531 = vmax.f32 %v2135, %v2143
    %v2532 = vmax.f32 %v2531, %v2151
    %v2533 = vmax.f32 %v2532, %v2159
    %v2534 = vmax.f32 %v2533, %v2167
    %v2535 = vmax.f32 %v2534, %v2175
    %v2536 = vmax.f32 %v2535, %v2183
    %v2537 = vmax.f32 %v2536, %v2191
    %v2538 = vmax.f32 %v2537, %v2199
    %v2539 = vmax.f32 %v2538, %v2207
    %v2540 = vmax.f32 %v2539, %v2215
    %v2541 = vmax.f32 %v2540, %v2223
    %v2542 = vmax.f32 %v2541, %v2231
    %v2543 = vmax.f32 %v2542, %v2239
    %v2544 = vmax.f32 %v2543, %v2247
    %v2545 = vmax.f32 %v2544, %v2255
    %v2546 = vrot.slane %v2545, 4
    %v2547 = vmax.f32 %v2545, %v2546
    %v2548 = vrot.slane %v2547, 2
    %v2549 = vmax.f32 %v2547, %v2548
    %v2550 = vrot.slane %v2549, 1
    %v2551 = vmax.f32 %v2549, %v2550
    %v2552 = vmax.f32 %v2136, %v2144
    %v2553 = vmax.f32 %v2552, %v2152
    %v2554 = vmax.f32 %v2553, %v2160
    %v2555 = vmax.f32 %v2554, %v2168
    %v2556 = vmax.f32 %v2555, %v2176
    %v2557 = vmax.f32 %v2556, %v2184
    %v2558 = vmax.f32 %v2557, %v2192
    %v2559 = vmax.f32 %v2558, %v2200
    %v2560 = vmax.f32 %v2559, %v2208
    %v2561 = vmax.f32 %v2560, %v2216
    %v2562 = vmax.f32 %v2561, %v2224
    %v2563 = vmax.f32 %v2562, %v2232
    %v2564 = vmax.f32 %v2563, %v2240
    %v2565 = vmax.f32 %v2564, %v2248
    %v2566 = vmax.f32 %v2565, %v2256
    %v2567 = vrot.slane %v2566, 4
    %v2568 = vmax.f32 %v2566, %v2567
    %v2569 = vrot.slane %v2568, 2
    %v2570 = vmax.f32 %v2568, %v2569
    %v2571 = vrot.slane %v2570, 1
    %v2572 = vmax.f32 %v2570, %v2571
    %v2573 = vmax.f32 %v2137, %v2145
    %v2574 = vmax.f32 %v2573, %v2153
    %v2575 = vmax.f32 %v2574, %v2161
    %v2576 = vmax.f32 %v2575, %v2169
    %v2577 = vmax.f32 %v2576, %v2177
    %v2578 = vmax.f32 %v2577, %v2185
    %v2579 = vmax.f32 %v2578, %v2193
    %v2580 = vmax.f32 %v2579, %v2201
    %v2581 = vmax.f32 %v2580, %v2209
    %v2582 = vmax.f32 %v2581, %v2217
    %v2583 = vmax.f32 %v2582, %v2225
    %v2584 = vmax.f32 %v2583, %v2233
    %v2585 = vmax.f32 %v2584, %v2241
    %v2586 = vmax.f32 %v2585, %v2249
    %v2587 = vmax.f32 %v2586, %v2257
    %v2588 = vrot.slane %v2587, 4
    %v2589 = vmax.f32 %v2587, %v2588
    %v2590 = vrot.slane %v2589, 2
    %v2591 = vmax.f32 %v2589, %v2590
    %v2592 = vrot.slane %v2591, 1
    %v2593 = vmax.f32 %v2591, %v2592
    %vm2594 = vcmask 1040384
    %v2595 = vsel %vm2594, %v2278, %v2446
    %v2596 = vsel %vm2594, %v2299, %v2467
    %v2597 = vsel %vm2594, %v2320, %v2488
    %v2598 = vsel %vm2594, %v2341, %v2509
    %v2599 = vsel %vm2594, %v2362, %v2530
    %v2600 = vsel %vm2594, %v2383, %v2551
    %v2601 = vsel %vm2594, %v2404, %v2572
    %v2602 = vsel %vm2594, %v2425, %v2593
    %p2603 = scmp.eq.s32.totalorder 0, 0
    // Predicated region
    $region34: #{tpu_custom_call.1} parent=1 // pred_check
      %p2604 = pneg %p2603
    $region35: #{tpu_custom_call.1} parent=1 // pred_check_branch
      %2606 = sbr.rel (%p2604) target = $region37
    $region36: #{tpu_custom_call.1} parent=1 // pred_region
      %v2615 = vcombine.low %v2595, %v2596
      %v2616 = vcombine.low %v2597, %v2598
      %v2618 = vunpack.c.l.s4 1983009808
      %v2619 = vunpack.c.0.s8 %v2618
      %v2620 = vlaneseq
      %v2621 = vshrl.u32 %v2620, 7
      %v2622 = vsub.s32 %v2619, %v2621
      %v2623 = vrot.slane %v2615, %v2622
      %v2625 = vunpack.c.l.s4 1983009808
      %v2626 = vunpack.c.0.s8 %v2625
      %v2627 = vlaneseq
      %v2628 = vshrl.u32 %v2627, 7
      %v2629 = vsub.s32 %v2626, %v2628
      %v2630 = vrot.slane %v2616, %v2629
      %v2631 = vcombine.low %v2623, %v2630
      %v2632 = vcombine.low %v2599, %v2600
      %v2633 = vcombine.low %v2601, %v2602
      %v2635 = vunpack.c.l.s4 1983009808
      %v2636 = vunpack.c.0.s8 %v2635
      %v2637 = vlaneseq
      %v2638 = vshrl.u32 %v2637, 7
      %v2639 = vsub.s32 %v2636, %v2638
      %v2640 = vrot.slane %v2632, %v2639
      %v2642 = vunpack.c.l.s4 1983009808
      %v2643 = vunpack.c.0.s8 %v2642
      %v2644 = vlaneseq
      %v2645 = vshrl.u32 %v2644, 7
      %v2646 = vsub.s32 %v2643, %v2645
      %v2647 = vrot.slane %v2633, %v2646
      %v2648 = vcombine.low %v2640, %v2647
      %2651 = vst [vmem:[#allocation5] sm:$0xff] %v2631
      %2652 = vst [vmem:[#allocation5 + $0x8] sm:$0xff] %v2648
    $region37: #{tpu_custom_call.1} parent=1 // pred_fallthru
      _
    %p2653 = scmp.gt.s32.totalorder 0, 0
    // Predicated region
    $region38: #{tpu_custom_call.1} parent=1 // pred_check
      %p2654 = pneg %p2653
    $region39: #{tpu_custom_call.1} parent=1 // pred_check_branch
      %2656 = sbr.rel (%p2654) target = $region41
    $region40: #{tpu_custom_call.1} parent=1 // pred_region
      %v2657 = vld [vmem:[#allocation5] sm:$0xff]
      %v2658 = vld [vmem:[#allocation5 + $0x8] sm:$0xff]
      %v2667 = vcombine.low %v2595, %v2596
      %v2668 = vcombine.low %v2597, %v2598
      %v2670 = vunpack.c.l.s4 1983009808
      %v2671 = vunpack.c.0.s8 %v2670
      %v2672 = vlaneseq
      %v2673 = vshrl.u32 %v2672, 7
      %v2674 = vsub.s32 %v2671, %v2673
      %v2675 = vrot.slane %v2667, %v2674
      %v2677 = vunpack.c.l.s4 1983009808
      %v2678 = vunpack.c.0.s8 %v2677
      %v2679 = vlaneseq
      %v2680 = vshrl.u32 %v2679, 7
      %v2681 = vsub.s32 %v2678, %v2680
      %v2682 = vrot.slane %v2668, %v2681
      %v2683 = vcombine.low %v2675, %v2682
      %v2684 = vcombine.low %v2599, %v2600
      %v2685 = vcombine.low %v2601, %v2602
      %v2687 = vunpack.c.l.s4 1983009808
      %v2688 = vunpack.c.0.s8 %v2687
      %v2689 = vlaneseq
      %v2690 = vshrl.u32 %v2689, 7
      %v2691 = vsub.s32 %v2688, %v2690
      %v2692 = vrot.slane %v2684, %v2691
      %v2694 = vunpack.c.l.s4 1983009808
      %v2695 = vunpack.c.0.s8 %v2694
      %v2696 = vlaneseq
      %v2697 = vshrl.u32 %v2696, 7
      %v2698 = vsub.s32 %v2695, %v2697
      %v2699 = vrot.slane %v2685, %v2698
      %v2700 = vcombine.low %v2692, %v2699
      %v2703 = vmax.f32 %v2657, %v2683
      %v2704 = vmax.f32 %v2658, %v2700
      %2705 = vst [vmem:[#allocation5] sm:$0xff] %v2703
      %2706 = vst [vmem:[#allocation5 + $0x8] sm:$0xff] %v2704
    $region41: #{tpu_custom_call.1} parent=1 // pred_fallthru
      _
    // Predicated region
    $region42: #{tpu_custom_call.1} parent=1 // pred_check
      _
    $region43: #{tpu_custom_call.1} parent=1 // pred_check_branch
      %2708 = sbr.rel (0) target = $region45
    $region44: #{tpu_custom_call.1} parent=1 // pred_region
      %s2710 = ssub.s32 256, 256
      %2711 = vsyncadd [#allocation4], %s2710
      %s2713 = sshll.u32 [#allocation5], 4
      %s2714 = int_to_ptr.vmem [resolvable:$true] %s2713
      %2716 = dma.vmem_to_hbm [thread:$0]  %s2714, 256, %s7, [#allocation4]
    $region45: #{tpu_custom_call.1} parent=1 // pred_fallthru
      _
    // Predicated region
    $region46: #{tpu_custom_call.1} parent=1 // pred_check
      _
    $region47: #{tpu_custom_call.1} parent=1 // pred_check_branch
      %2718 = sbr.rel (0) target = $region49
    $region48: #{tpu_custom_call.1} parent=1 // pred_region
      %2719 = dma.done [#allocation4], 256
    $region49: #{tpu_custom_call.1} parent=1 // pred_fallthru
      _
    %2720 = vsyncpa [#allocation3], 1
    %2721 = vsyncpa [#allocation4], 1

</llo_original>
